<compile_context>
chip_gen: v6e
topology: v6e:2x2x1
jax: 0.10.0
libtpu: 0.0.40
codegen_flags: <defaults>
</compile_context>

<pallas_src>
import math
import jax
import jax.numpy as jnp
import numpy as np
from jax import lax
from jax.experimental import pallas as pl
from jax.experimental.pallas import tpu as pltpu


# ----------------------------------------------------------------------------
# Pallas kernel: shifted-tap conv matmuls + ReLU + hoisted gate matmul + LSTM
# recurrence (vreg-resident h/c) + lane-dense FC.
# ----------------------------------------------------------------------------
def cnn_lstm_kernel(xpad_ref,    # (Lp*Bp, D)   time-major padded embeddings
                    wconv_ref,   # (3, D, Cp)   conv tap weights (row d, col c)
                    bconv_ref,   # (1, Cp)
                    wih_ref,     # (Cp, 4H)     LSTM W_ih^T (gate order i,f,g,o)
                    whh_ref,     # (H, 4H)      LSTM W_hh^T
                    b_ref,       # (1, 4H)      b_ih + b_hh
                    wfc_ref,     # (H, NCp)     fc W^T, zero-padded to NCp lanes
                    bfc_ref,     # (1, NCp)
                    out_ref):    # (Bp, NCp)
    H = whh_ref.shape[0]
    Bp = out_ref.shape[0]
    D = xpad_ref.shape[1]
    Cp = wconv_ref.shape[2]
    KH = wconv_ref.shape[0]                     # 3
    Lp = xpad_ref.shape[0] // Bp
    T = Lp - KH + 1                             # = L + 2

    # ---- Conv2d(1, C, (3, D), padding=(2, 0)) as 3 shifted-tap matmuls ------
    # Row (t*Bp + b) of tap k is the padded embedding at (time t+k, batch b),
    # so each tap is a contiguous, sublane-aligned row window of xpad_ref.
    conv = jnp.zeros((T * Bp, Cp), jnp.float32)
    for k in range(KH):
        tap = xpad_ref[k * Bp:k * Bp + T * Bp, :]            # (T*Bp, D)
        conv = conv + jnp.dot(tap, wconv_ref[k],
                              preferred_element_type=jnp.float32)
    conv = jnp.maximum(conv + bconv_ref[...], 0.0)            # (T*Bp, Cp)
    # TODO(synk): nn.Dropout is identity in eval mode; training RNG mask omitted.

    # ---- Hoisted input-gate matmul: one (T*Bp,Cp)@(Cp,4H) MXU push + bias ----
    xg = jnp.dot(conv, wih_ref[...],
                 preferred_element_type=jnp.float32) + b_ref[...]   # (T*Bp, 4H)

    whh = whh_ref[...]                                        # (H, 4H)

    # ---- LSTM recurrence (batch_first, single layer, h0=c0=0) ---------------
    # h/c stay in vregs; the per-step gate term is a static, sublane-aligned
    # slice of the in-register xg value (no VMEM scratch round-trip).
    h = jnp.zeros((Bp, H), jnp.float32)
    c = jnp.zeros((Bp, H), jnp.float32)
    for t in range(T):
        gates = xg[t * Bp:(t + 1) * Bp, :] + jnp.dot(
            h, whh, preferred_element_type=jnp.float32)       # (Bp, 4H)
        sig = jax.nn.sigmoid(gates)           # full 128-lane EUP pass
        th = jnp.tanh(gates)                  # full 128-lane EUP pass
        i_g = sig[:, 0 * H:1 * H]
        f_g = sig[:, 1 * H:2 * H]
        g_g = th[:, 2 * H:3 * H]
        o_g = sig[:, 3 * H:4 * H]
        c = f_g * c + i_g * g_g
        h = o_g * jnp.tanh(c)

    # ---- fc on last timestep's hidden state (lane-dense padded output) ------
    out_ref[...] = (jnp.dot(h, wfc_ref[...],
                            preferred_element_type=jnp.float32)
                    + bfc_ref[...])


# ----------------------------------------------------------------------------
# Wrapper: embedding gather + padding (glue), then pallas_call.
# ----------------------------------------------------------------------------
def cnn_lstm_forward(input_ids, params, num_classes):
    emb = params['embedding']                 # (V, D)
    wconv_taps = params['wconv_taps']         # (3, D, Cp)
    bconv_pad = params['bconv_pad']           # (1, Cp)
    wih_t_pad = params['wih_t_pad']           # (Cp, 4H)
    whh_t = params['whh_t']                   # (H, 4H)
    b_lstm = params['b_lstm']                 # (1, 4H)
    wfc_pad = params['wfc_pad']               # (H, NCp)
    bfc_pad = params['bfc_pad']               # (1, NCp)

    B, L = input_ids.shape
    D = emb.shape[1]
    KH = 3
    T = L + 2
    Lp = L + 4
    Bp = ((B + 7) // 8) * 8                   # pad batch to sublane multiple

    H = whh_t.shape[0]
    H4 = whh_t.shape[1]
    Cp = wconv_taps.shape[2]
    NCp = wfc_pad.shape[1]

    # Time-major embedding gather; zero-pad time (conv padding) and batch.
    x = jnp.take(emb, input_ids.T, axis=0)                    # (L, B, D)
    x = jnp.pad(x, ((2, 2), (0, Bp - B), (0, 0)))             # (Lp, Bp, D)
    xflat = x.reshape(Lp * Bp, D)                             # (Lp*Bp, D)

    flops = (2 * T * Bp * (KH * D * Cp + Cp * H4)             # conv + gate matmuls
             + 2 * T * Bp * H * H4                            # recurrence matmuls
             + 2 * Bp * H * NCp)                              # fc
    transcendentals = 3 * T * Bp * H4                         # sigmoid/tanh (approx)
    bytes_accessed = 4 * (Lp * Bp * D + 3 * D * Cp + Cp * H4 + H * H4
                          + H * NCp + 3 * NCp + H4 + Bp * NCp)

    vspec = pl.BlockSpec(memory_space=pltpu.MemorySpace.VMEM)
    out_pad = pl.pallas_call(
        cnn_lstm_kernel,
        out_shape=jax.ShapeDtypeStruct((Bp, NCp), jnp.float32),
        in_specs=[vspec] * 8,
        out_specs=vspec,
        compiler_params=pltpu.CompilerParams(
            vmem_limit_bytes=32 * 1024 * 1024),
        cost_estimate=pl.CostEstimate(flops=flops,
                                      transcendentals=transcendentals,
                                      bytes_accessed=bytes_accessed),
    )(xflat, wconv_taps, bconv_pad, wih_t_pad, whh_t, b_lstm, wfc_pad, bfc_pad)
    return out_pad[:B, :num_classes]


# ----------------------------------------------------------------------------
# Pure-JAX reference (mirrors the PyTorch forward) for a sanity check.
# ----------------------------------------------------------------------------
def cnn_lstm_reference(input_ids, params):
    emb = params['embedding']
    wconv_taps = params['wconv_taps_ref']     # (3, D, C) unpadded
    bconv = params['bconv']                   # (1, C)
    wih_t, whh_t, b_lstm = params['wih_t'], params['whh_t'], params['b_lstm']
    wfc_t, bfc = params['wfc_t'], params['bfc']

    x = jnp.take(emb, input_ids, axis=0)                      # (B, L, D)
    xpad = jnp.pad(x, ((0, 0), (2, 2), (0, 0)))               # (B, Lp, D)
    B, Lp, D = xpad.shape
    T = Lp - 2
    C = bconv.shape[1]
    H = whh_t.shape[0]

    conv = jnp.zeros((B, T, C), jnp.float32)
    for k in range(3):
        conv = conv + jnp.einsum('btd,dc->btc', xpad[:, k:k + T, :],
                                 wconv_taps[k])
    conv = jnp.maximum(conv + bconv, 0.0)

    def scan_step(carry, xt):
        h, c = carry
        gates = xt @ wih_t + h @ whh_t + b_lstm[0]
        i_g = jax.nn.sigmoid(gates[:, 0 * H:1 * H])
        f_g = jax.nn.sigmoid(gates[:, 1 * H:2 * H])
        g_g = jnp.tanh(gates[:, 2 * H:3 * H])
        o_g = jax.nn.sigmoid(gates[:, 3 * H:4 * H])
        c_new = f_g * c + i_g * g_g
        h_new = o_g * jnp.tanh(c_new)
        return (h_new, c_new), None

    h0 = jnp.zeros((B, H), jnp.float32)
    c0 = jnp.zeros((B, H), jnp.float32)
    (h_last, _), _ = lax.scan(scan_step, (h0, c0), jnp.transpose(conv, (1, 0, 2)))
    return h_last @ wfc_t + bfc[0]


# ----------------------------------------------------------------------------
# Deterministic parameter init (synthetic; shapes from the module __init__).
# ----------------------------------------------------------------------------
def make_params(key, vocab_size, embed_size, output_channel, lstm_hidden,
                num_classes):
    ks = jax.random.split(key, 10)
    D, C, H, NC = embed_size, output_channel, lstm_hidden, num_classes
    Cp = max(128, ((C + 127) // 128) * 128)     # lane-dense padded conv channels
    NCp = max(128, ((NC + 127) // 128) * 128)   # lane-dense padded FC output

    emb = jax.random.normal(ks[0], (vocab_size, D), jnp.float32) * 0.1  # pre_embed

    kconv = 1.0 / math.sqrt(1 * 3 * D)
    wconv_pt = jax.random.uniform(ks[1], (C, 1, 3, D), jnp.float32, -kconv, kconv)
    bconv = jax.random.uniform(ks[2], (C,), jnp.float32, -kconv, kconv)

    klstm = 1.0 / math.sqrt(H)
    wih = jax.random.uniform(ks[3], (4 * H, C), jnp.float32, -klstm, klstm)
    whh = jax.random.uniform(ks[4], (4 * H, H), jnp.float32, -klstm, klstm)
    bih = jax.random.uniform(ks[5], (4 * H,), jnp.float32, -klstm, klstm)
    bhh = jax.random.uniform(ks[6], (4 * H,), jnp.float32, -klstm, klstm)

    kfc = 1.0 / math.sqrt(H)
    wfc = jax.random.uniform(ks[7], (NC, H), jnp.float32, -kfc, kfc)
    bfc = jax.random.uniform(ks[8], (NC,), jnp.float32, -kfc, kfc)

    # Per-tap conv weights: wconv_taps_ref[k, d, c] = wconv_pt[c, 0, k, d]
    wconv_taps_ref = jnp.transpose(wconv_pt[:, 0, :, :], (1, 2, 0))   # (3, D, C)
    wconv_taps = jnp.zeros((3, D, Cp), jnp.float32).at[:, :, :C].set(wconv_taps_ref)
    bconv_pad = jnp.zeros((1, Cp), jnp.float32).at[:, :C].set(bconv)

    wih_t = wih.T                                                     # (C, 4H)
    wih_t_pad = jnp.zeros((Cp, 4 * H), jnp.float32).at[:C, :].set(wih_t)

    wfc_pad = jnp.zeros((H, NCp), jnp.float32).at[:, :NC].set(wfc.T)
    bfc_pad = jnp.zeros((1, NCp), jnp.float32).at[:, :NC].set(bfc)

    return {
        'embedding': emb,
        # kernel (padded / fused) params
        'wconv_taps': wconv_taps,                                     # (3, D, Cp)
        'bconv_pad': bconv_pad,                                       # (1, Cp)
        'wih_t_pad': wih_t_pad,                                       # (Cp, 4H)
        'whh_t': whh.T,                                               # (H, 4H)
        'b_lstm': (bih + bhh).reshape(1, 4 * H),
        'wfc_pad': wfc_pad,                                           # (H, NCp)
        'bfc_pad': bfc_pad,                                           # (1, NCp)
        # reference (unpadded) params
        'wconv_taps_ref': wconv_taps_ref,                             # (3, D, C)
        'bconv': bconv.reshape(1, C),
        'wih_t': wih_t,                                               # (C, 4H)
        'wfc_t': wfc.T,                                               # (H, NC)
        'bfc': bfc.reshape(1, NC),
    }


if __name__ == "__main__":
    # Small, module-consistent shapes.
    B, L = 2, 8
    vocab_size, embed_size = 32, 16
    output_channel, lstm_hidden, num_classes = 8, 32, 4

    key = jax.random.PRNGKey(0)
    pkey, dkey = jax.random.split(key)
    params = make_params(pkey, vocab_size, embed_size, output_channel,
                         lstm_hidden, num_classes)
    input_ids = jax.random.randint(dkey, (B, L), 0, vocab_size, dtype=jnp.int32)

    fwd = jax.jit(cnn_lstm_forward, static_argnums=2)
    logits = fwd(input_ids, params, num_classes)
    jax.block_until_ready(logits)

    ref = jax.jit(cnn_lstm_reference)(input_ids, params)
    jax.block_until_ready(ref)

    assert logits.shape == (B, num_classes)
    np.testing.assert_allclose(np.asarray(logits), np.asarray(ref),
                               rtol=1e-5, atol=1e-5)
    print("KERNEL_OK")
</pallas_src>

<mosaic_0001>
module attributes {stable_mosaic.version = 11 : i64} {
  func.func @cnn_lstm_kernel(%arg0: memref<96x16xf32, #tpu.memory_space<vmem>>, %arg1: memref<3x16x128xf32, #tpu.memory_space<vmem>>, %arg2: memref<1x128xf32, #tpu.memory_space<vmem>>, %arg3: memref<128x128xf32, #tpu.memory_space<vmem>>, %arg4: memref<32x128xf32, #tpu.memory_space<vmem>>, %arg5: memref<1x128xf32, #tpu.memory_space<vmem>>, %arg6: memref<32x128xf32, #tpu.memory_space<vmem>>, %arg7: memref<1x128xf32, #tpu.memory_space<vmem>>, %arg8: memref<8x128xf32, #tpu.memory_space<vmem>>) attributes {dimension_semantics = [], scalar_prefetch = 0 : i64, scratch_operands = 0 : i64, tpu.core_type = #tpu.core_type<tc>} {
    %cst = arith.constant 0.000000e+00 : f32
    %0 = vector.broadcast %cst : f32 to vector<80x128xf32>
    %c0 = arith.constant 0 : index
    %c0_0 = arith.constant 0 : index
    %1 = vector.load %arg0[%c0, %c0_0] : memref<96x16xf32, #tpu.memory_space<vmem>>, vector<80x16xf32>
    %c0_1 = arith.constant 0 : index
    %c0_2 = arith.constant 0 : index
    %c0_3 = arith.constant 0 : index
    %2 = vector.load %arg1[%c0_1, %c0_2, %c0_3] : memref<3x16x128xf32, #tpu.memory_space<vmem>>, vector<1x16x128xf32>
    %3 = vector.shape_cast %2 : vector<1x16x128xf32> to vector<16x128xf32>
    %cst_4 = arith.constant dense<0.000000e+00> : vector<80x128xf32>
    %4 = tpu.matmul %1, %3, %cst_4 {dimension_numbers = #tpu.dot_dimension_numbers<[1], [0], [0], [1], [0, 0, 1, 1], [], []>} : vector<80x16xf32>, vector<16x128xf32>, vector<80x128xf32> -> vector<80x128xf32>
    %5 = arith.addf %0, %4 : vector<80x128xf32>
    %c8 = arith.constant 8 : index
    %c0_5 = arith.constant 0 : index
    %6 = vector.load %arg0[%c8, %c0_5] : memref<96x16xf32, #tpu.memory_space<vmem>>, vector<80x16xf32>
    %c1 = arith.constant 1 : index
    %c0_6 = arith.constant 0 : index
    %c0_7 = arith.constant 0 : index
    %7 = vector.load %arg1[%c1, %c0_6, %c0_7] : memref<3x16x128xf32, #tpu.memory_space<vmem>>, vector<1x16x128xf32>
    %8 = vector.shape_cast %7 : vector<1x16x128xf32> to vector<16x128xf32>
    %cst_8 = arith.constant dense<0.000000e+00> : vector<80x128xf32>
    %9 = tpu.matmul %6, %8, %cst_8 {dimension_numbers = #tpu.dot_dimension_numbers<[1], [0], [0], [1], [0, 0, 1, 1], [], []>} : vector<80x16xf32>, vector<16x128xf32>, vector<80x128xf32> -> vector<80x128xf32>
    %10 = arith.addf %5, %9 : vector<80x128xf32>
    %c16 = arith.constant 16 : index
    %c0_9 = arith.constant 0 : index
    %11 = vector.load %arg0[%c16, %c0_9] : memref<96x16xf32, #tpu.memory_space<vmem>>, vector<80x16xf32>
    %c2 = arith.constant 2 : index
    %c0_10 = arith.constant 0 : index
    %c0_11 = arith.constant 0 : index
    %12 = vector.load %arg1[%c2, %c0_10, %c0_11] : memref<3x16x128xf32, #tpu.memory_space<vmem>>, vector<1x16x128xf32>
    %13 = vector.shape_cast %12 : vector<1x16x128xf32> to vector<16x128xf32>
    %cst_12 = arith.constant dense<0.000000e+00> : vector<80x128xf32>
    %14 = tpu.matmul %11, %13, %cst_12 {dimension_numbers = #tpu.dot_dimension_numbers<[1], [0], [0], [1], [0, 0, 1, 1], [], []>} : vector<80x16xf32>, vector<16x128xf32>, vector<80x128xf32> -> vector<80x128xf32>
    %15 = arith.addf %10, %14 : vector<80x128xf32>
    %c0_13 = arith.constant 0 : index
    %c0_14 = arith.constant 0 : index
    %16 = vector.load %arg2[%c0_13, %c0_14] : memref<1x128xf32, #tpu.memory_space<vmem>>, vector<1x128xf32>
    %17 = vector.broadcast %16 : vector<1x128xf32> to vector<80x128xf32>
    %18 = arith.addf %15, %17 : vector<80x128xf32>
    %cst_15 = arith.constant 0.000000e+00 : f32
    %19 = vector.broadcast %cst_15 : f32 to vector<80x128xf32>
    %20 = arith.maximumf %18, %19 : vector<80x128xf32>
    %c0_16 = arith.constant 0 : index
    %c0_17 = arith.constant 0 : index
    %21 = vector.load %arg3[%c0_16, %c0_17] : memref<128x128xf32, #tpu.memory_space<vmem>>, vector<128x128xf32>
    %cst_18 = arith.constant dense<0.000000e+00> : vector<80x128xf32>
    %22 = tpu.matmul %20, %21, %cst_18 {dimension_numbers = #tpu.dot_dimension_numbers<[1], [0], [0], [1], [0, 0, 1, 1], [], []>} : vector<80x128xf32>, vector<128x128xf32>, vector<80x128xf32> -> vector<80x128xf32>
    %c0_19 = arith.constant 0 : index
    %c0_20 = arith.constant 0 : index
    %23 = vector.load %arg5[%c0_19, %c0_20] : memref<1x128xf32, #tpu.memory_space<vmem>>, vector<1x128xf32>
    %24 = vector.broadcast %23 : vector<1x128xf32> to vector<80x128xf32>
    %25 = arith.addf %22, %24 : vector<80x128xf32>
    %c0_21 = arith.constant 0 : index
    %c0_22 = arith.constant 0 : index
    %26 = vector.load %arg4[%c0_21, %c0_22] : memref<32x128xf32, #tpu.memory_space<vmem>>, vector<32x128xf32>
    %cst_23 = arith.constant 0.000000e+00 : f32
    %27 = vector.broadcast %cst_23 : f32 to vector<8x32xf32>
    %cst_24 = arith.constant 0.000000e+00 : f32
    %28 = vector.broadcast %cst_24 : f32 to vector<8x32xf32>
    %29 = vector.extract_strided_slice %25 {offsets = [0, 0], sizes = [8, 128], strides = [1, 1]} : vector<80x128xf32> to vector<8x128xf32>
    %cst_25 = arith.constant dense<0.000000e+00> : vector<8x128xf32>
    %30 = tpu.matmul %27, %26, %cst_25 {dimension_numbers = #tpu.dot_dimension_numbers<[1], [0], [0], [1], [0, 0, 1, 1], [], []>} : vector<8x32xf32>, vector<32x128xf32>, vector<8x128xf32> -> vector<8x128xf32>
    %31 = arith.addf %29, %30 : vector<8x128xf32>
    %32 = arith.negf %31 : vector<8x128xf32>
    %33 = math.exp %32 : vector<8x128xf32>
    %cst_26 = arith.constant 1.000000e+00 : f32
    %34 = vector.broadcast %cst_26 : f32 to vector<8x128xf32>
    %35 = arith.addf %34, %33 : vector<8x128xf32>
    %36 = arith.divf %34, %35 : vector<8x128xf32>
    %37 = math.tanh %31 : vector<8x128xf32>
    %38 = vector.extract_strided_slice %36 {offsets = [0, 0], sizes = [8, 32], strides = [1, 1]} : vector<8x128xf32> to vector<8x32xf32>
    %39 = vector.extract_strided_slice %36 {offsets = [0, 32], sizes = [8, 32], strides = [1, 1]} : vector<8x128xf32> to vector<8x32xf32>
    %40 = vector.extract_strided_slice %37 {offsets = [0, 64], sizes = [8, 32], strides = [1, 1]} : vector<8x128xf32> to vector<8x32xf32>
    %41 = vector.extract_strided_slice %36 {offsets = [0, 96], sizes = [8, 32], strides = [1, 1]} : vector<8x128xf32> to vector<8x32xf32>
    %42 = arith.mulf %39, %28 : vector<8x32xf32>
    %43 = arith.mulf %38, %40 : vector<8x32xf32>
    %44 = arith.addf %42, %43 : vector<8x32xf32>
    %45 = math.tanh %44 : vector<8x32xf32>
    %46 = arith.mulf %41, %45 : vector<8x32xf32>
    %47 = vector.extract_strided_slice %25 {offsets = [8, 0], sizes = [8, 128], strides = [1, 1]} : vector<80x128xf32> to vector<8x128xf32>
    %cst_27 = arith.constant dense<0.000000e+00> : vector<8x128xf32>
    %48 = tpu.matmul %46, %26, %cst_27 {dimension_numbers = #tpu.dot_dimension_numbers<[1], [0], [0], [1], [0, 0, 1, 1], [], []>} : vector<8x32xf32>, vector<32x128xf32>, vector<8x128xf32> -> vector<8x128xf32>
    %49 = arith.addf %47, %48 : vector<8x128xf32>
    %50 = arith.negf %49 : vector<8x128xf32>
    %51 = math.exp %50 : vector<8x128xf32>
    %cst_28 = arith.constant 1.000000e+00 : f32
    %52 = vector.broadcast %cst_28 : f32 to vector<8x128xf32>
    %53 = arith.addf %52, %51 : vector<8x128xf32>
    %54 = arith.divf %52, %53 : vector<8x128xf32>
    %55 = math.tanh %49 : vector<8x128xf32>
    %56 = vector.extract_strided_slice %54 {offsets = [0, 0], sizes = [8, 32], strides = [1, 1]} : vector<8x128xf32> to vector<8x32xf32>
    %57 = vector.extract_strided_slice %54 {offsets = [0, 32], sizes = [8, 32], strides = [1, 1]} : vector<8x128xf32> to vector<8x32xf32>
    %58 = vector.extract_strided_slice %55 {offsets = [0, 64], sizes = [8, 32], strides = [1, 1]} : vector<8x128xf32> to vector<8x32xf32>
    %59 = vector.extract_strided_slice %54 {offsets = [0, 96], sizes = [8, 32], strides = [1, 1]} : vector<8x128xf32> to vector<8x32xf32>
    %60 = arith.mulf %57, %44 : vector<8x32xf32>
    %61 = arith.mulf %56, %58 : vector<8x32xf32>
    %62 = arith.addf %60, %61 : vector<8x32xf32>
    %63 = math.tanh %62 : vector<8x32xf32>
    %64 = arith.mulf %59, %63 : vector<8x32xf32>
    %65 = vector.extract_strided_slice %25 {offsets = [16, 0], sizes = [8, 128], strides = [1, 1]} : vector<80x128xf32> to vector<8x128xf32>
    %cst_29 = arith.constant dense<0.000000e+00> : vector<8x128xf32>
    %66 = tpu.matmul %64, %26, %cst_29 {dimension_numbers = #tpu.dot_dimension_numbers<[1], [0], [0], [1], [0, 0, 1, 1], [], []>} : vector<8x32xf32>, vector<32x128xf32>, vector<8x128xf32> -> vector<8x128xf32>
    %67 = arith.addf %65, %66 : vector<8x128xf32>
    %68 = arith.negf %67 : vector<8x128xf32>
    %69 = math.exp %68 : vector<8x128xf32>
    %cst_30 = arith.constant 1.000000e+00 : f32
    %70 = vector.broadcast %cst_30 : f32 to vector<8x128xf32>
    %71 = arith.addf %70, %69 : vector<8x128xf32>
    %72 = arith.divf %70, %71 : vector<8x128xf32>
    %73 = math.tanh %67 : vector<8x128xf32>
    %74 = vector.extract_strided_slice %72 {offsets = [0, 0], sizes = [8, 32], strides = [1, 1]} : vector<8x128xf32> to vector<8x32xf32>
    %75 = vector.extract_strided_slice %72 {offsets = [0, 32], sizes = [8, 32], strides = [1, 1]} : vector<8x128xf32> to vector<8x32xf32>
    %76 = vector.extract_strided_slice %73 {offsets = [0, 64], sizes = [8, 32], strides = [1, 1]} : vector<8x128xf32> to vector<8x32xf32>
    %77 = vector.extract_strided_slice %72 {offsets = [0, 96], sizes = [8, 32], strides = [1, 1]} : vector<8x128xf32> to vector<8x32xf32>
    %78 = arith.mulf %75, %62 : vector<8x32xf32>
    %79 = arith.mulf %74, %76 : vector<8x32xf32>
    %80 = arith.addf %78, %79 : vector<8x32xf32>
    %81 = math.tanh %80 : vector<8x32xf32>
    %82 = arith.mulf %77, %81 : vector<8x32xf32>
    %83 = vector.extract_strided_slice %25 {offsets = [24, 0], sizes = [8, 128], strides = [1, 1]} : vector<80x128xf32> to vector<8x128xf32>
    %cst_31 = arith.constant dense<0.000000e+00> : vector<8x128xf32>
    %84 = tpu.matmul %82, %26, %cst_31 {dimension_numbers = #tpu.dot_dimension_numbers<[1], [0], [0], [1], [0, 0, 1, 1], [], []>} : vector<8x32xf32>, vector<32x128xf32>, vector<8x128xf32> -> vector<8x128xf32>
    %85 = arith.addf %83, %84 : vector<8x128xf32>
    %86 = arith.negf %85 : vector<8x128xf32>
    %87 = math.exp %86 : vector<8x128xf32>
    %cst_32 = arith.constant 1.000000e+00 : f32
    %88 = vector.broadcast %cst_32 : f32 to vector<8x128xf32>
    %89 = arith.addf %88, %87 : vector<8x128xf32>
    %90 = arith.divf %88, %89 : vector<8x128xf32>
    %91 = math.tanh %85 : vector<8x128xf32>
    %92 = vector.extract_strided_slice %90 {offsets = [0, 0], sizes = [8, 32], strides = [1, 1]} : vector<8x128xf32> to vector<8x32xf32>
    %93 = vector.extract_strided_slice %90 {offsets = [0, 32], sizes = [8, 32], strides = [1, 1]} : vector<8x128xf32> to vector<8x32xf32>
    %94 = vector.extract_strided_slice %91 {offsets = [0, 64], sizes = [8, 32], strides = [1, 1]} : vector<8x128xf32> to vector<8x32xf32>
    %95 = vector.extract_strided_slice %90 {offsets = [0, 96], sizes = [8, 32], strides = [1, 1]} : vector<8x128xf32> to vector<8x32xf32>
    %96 = arith.mulf %93, %80 : vector<8x32xf32>
    %97 = arith.mulf %92, %94 : vector<8x32xf32>
    %98 = arith.addf %96, %97 : vector<8x32xf32>
    %99 = math.tanh %98 : vector<8x32xf32>
    %100 = arith.mulf %95, %99 : vector<8x32xf32>
    %101 = vector.extract_strided_slice %25 {offsets = [32, 0], sizes = [8, 128], strides = [1, 1]} : vector<80x128xf32> to vector<8x128xf32>
    %cst_33 = arith.constant dense<0.000000e+00> : vector<8x128xf32>
    %102 = tpu.matmul %100, %26, %cst_33 {dimension_numbers = #tpu.dot_dimension_numbers<[1], [0], [0], [1], [0, 0, 1, 1], [], []>} : vector<8x32xf32>, vector<32x128xf32>, vector<8x128xf32> -> vector<8x128xf32>
    %103 = arith.addf %101, %102 : vector<8x128xf32>
    %104 = arith.negf %103 : vector<8x128xf32>
    %105 = math.exp %104 : vector<8x128xf32>
    %cst_34 = arith.constant 1.000000e+00 : f32
    %106 = vector.broadcast %cst_34 : f32 to vector<8x128xf32>
    %107 = arith.addf %106, %105 : vector<8x128xf32>
    %108 = arith.divf %106, %107 : vector<8x128xf32>
    %109 = math.tanh %103 : vector<8x128xf32>
    %110 = vector.extract_strided_slice %108 {offsets = [0, 0], sizes = [8, 32], strides = [1, 1]} : vector<8x128xf32> to vector<8x32xf32>
    %111 = vector.extract_strided_slice %108 {offsets = [0, 32], sizes = [8, 32], strides = [1, 1]} : vector<8x128xf32> to vector<8x32xf32>
    %112 = vector.extract_strided_slice %109 {offsets = [0, 64], sizes = [8, 32], strides = [1, 1]} : vector<8x128xf32> to vector<8x32xf32>
    %113 = vector.extract_strided_slice %108 {offsets = [0, 96], sizes = [8, 32], strides = [1, 1]} : vector<8x128xf32> to vector<8x32xf32>
    %114 = arith.mulf %111, %98 : vector<8x32xf32>
    %115 = arith.mulf %110, %112 : vector<8x32xf32>
    %116 = arith.addf %114, %115 : vector<8x32xf32>
    %117 = math.tanh %116 : vector<8x32xf32>
    %118 = arith.mulf %113, %117 : vector<8x32xf32>
    %119 = vector.extract_strided_slice %25 {offsets = [40, 0], sizes = [8, 128], strides = [1, 1]} : vector<80x128xf32> to vector<8x128xf32>
    %cst_35 = arith.constant dense<0.000000e+00> : vector<8x128xf32>
    %120 = tpu.matmul %118, %26, %cst_35 {dimension_numbers = #tpu.dot_dimension_numbers<[1], [0], [0], [1], [0, 0, 1, 1], [], []>} : vector<8x32xf32>, vector<32x128xf32>, vector<8x128xf32> -> vector<8x128xf32>
    %121 = arith.addf %119, %120 : vector<8x128xf32>
    %122 = arith.negf %121 : vector<8x128xf32>
    %123 = math.exp %122 : vector<8x128xf32>
    %cst_36 = arith.constant 1.000000e+00 : f32
    %124 = vector.broadcast %cst_36 : f32 to vector<8x128xf32>
    %125 = arith.addf %124, %123 : vector<8x128xf32>
    %126 = arith.divf %124, %125 : vector<8x128xf32>
    %127 = math.tanh %121 : vector<8x128xf32>
    %128 = vector.extract_strided_slice %126 {offsets = [0, 0], sizes = [8, 32], strides = [1, 1]} : vector<8x128xf32> to vector<8x32xf32>
    %129 = vector.extract_strided_slice %126 {offsets = [0, 32], sizes = [8, 32], strides = [1, 1]} : vector<8x128xf32> to vector<8x32xf32>
    %130 = vector.extract_strided_slice %127 {offsets = [0, 64], sizes = [8, 32], strides = [1, 1]} : vector<8x128xf32> to vector<8x32xf32>
    %131 = vector.extract_strided_slice %126 {offsets = [0, 96], sizes = [8, 32], strides = [1, 1]} : vector<8x128xf32> to vector<8x32xf32>
    %132 = arith.mulf %129, %116 : vector<8x32xf32>
    %133 = arith.mulf %128, %130 : vector<8x32xf32>
    %134 = arith.addf %132, %133 : vector<8x32xf32>
    %135 = math.tanh %134 : vector<8x32xf32>
    %136 = arith.mulf %131, %135 : vector<8x32xf32>
    %137 = vector.extract_strided_slice %25 {offsets = [48, 0], sizes = [8, 128], strides = [1, 1]} : vector<80x128xf32> to vector<8x128xf32>
    %cst_37 = arith.constant dense<0.000000e+00> : vector<8x128xf32>
    %138 = tpu.matmul %136, %26, %cst_37 {dimension_numbers = #tpu.dot_dimension_numbers<[1], [0], [0], [1], [0, 0, 1, 1], [], []>} : vector<8x32xf32>, vector<32x128xf32>, vector<8x128xf32> -> vector<8x128xf32>
    %139 = arith.addf %137, %138 : vector<8x128xf32>
    %140 = arith.negf %139 : vector<8x128xf32>
    %141 = math.exp %140 : vector<8x128xf32>
    %cst_38 = arith.constant 1.000000e+00 : f32
    %142 = vector.broadcast %cst_38 : f32 to vector<8x128xf32>
    %143 = arith.addf %142, %141 : vector<8x128xf32>
    %144 = arith.divf %142, %143 : vector<8x128xf32>
    %145 = math.tanh %139 : vector<8x128xf32>
    %146 = vector.extract_strided_slice %144 {offsets = [0, 0], sizes = [8, 32], strides = [1, 1]} : vector<8x128xf32> to vector<8x32xf32>
    %147 = vector.extract_strided_slice %144 {offsets = [0, 32], sizes = [8, 32], strides = [1, 1]} : vector<8x128xf32> to vector<8x32xf32>
    %148 = vector.extract_strided_slice %145 {offsets = [0, 64], sizes = [8, 32], strides = [1, 1]} : vector<8x128xf32> to vector<8x32xf32>
    %149 = vector.extract_strided_slice %144 {offsets = [0, 96], sizes = [8, 32], strides = [1, 1]} : vector<8x128xf32> to vector<8x32xf32>
    %150 = arith.mulf %147, %134 : vector<8x32xf32>
    %151 = arith.mulf %146, %148 : vector<8x32xf32>
    %152 = arith.addf %150, %151 : vector<8x32xf32>
    %153 = math.tanh %152 : vector<8x32xf32>
    %154 = arith.mulf %149, %153 : vector<8x32xf32>
    %155 = vector.extract_strided_slice %25 {offsets = [56, 0], sizes = [8, 128], strides = [1, 1]} : vector<80x128xf32> to vector<8x128xf32>
    %cst_39 = arith.constant dense<0.000000e+00> : vector<8x128xf32>
    %156 = tpu.matmul %154, %26, %cst_39 {dimension_numbers = #tpu.dot_dimension_numbers<[1], [0], [0], [1], [0, 0, 1, 1], [], []>} : vector<8x32xf32>, vector<32x128xf32>, vector<8x128xf32> -> vector<8x128xf32>
    %157 = arith.addf %155, %156 : vector<8x128xf32>
    %158 = arith.negf %157 : vector<8x128xf32>
    %159 = math.exp %158 : vector<8x128xf32>
    %cst_40 = arith.constant 1.000000e+00 : f32
    %160 = vector.broadcast %cst_40 : f32 to vector<8x128xf32>
    %161 = arith.addf %160, %159 : vector<8x128xf32>
    %162 = arith.divf %160, %161 : vector<8x128xf32>
    %163 = math.tanh %157 : vector<8x128xf32>
    %164 = vector.extract_strided_slice %162 {offsets = [0, 0], sizes = [8, 32], strides = [1, 1]} : vector<8x128xf32> to vector<8x32xf32>
    %165 = vector.extract_strided_slice %162 {offsets = [0, 32], sizes = [8, 32], strides = [1, 1]} : vector<8x128xf32> to vector<8x32xf32>
    %166 = vector.extract_strided_slice %163 {offsets = [0, 64], sizes = [8, 32], strides = [1, 1]} : vector<8x128xf32> to vector<8x32xf32>
    %167 = vector.extract_strided_slice %162 {offsets = [0, 96], sizes = [8, 32], strides = [1, 1]} : vector<8x128xf32> to vector<8x32xf32>
    %168 = arith.mulf %165, %152 : vector<8x32xf32>
    %169 = arith.mulf %164, %166 : vector<8x32xf32>
    %170 = arith.addf %168, %169 : vector<8x32xf32>
    %171 = math.tanh %170 : vector<8x32xf32>
    %172 = arith.mulf %167, %171 : vector<8x32xf32>
    %173 = vector.extract_strided_slice %25 {offsets = [64, 0], sizes = [8, 128], strides = [1, 1]} : vector<80x128xf32> to vector<8x128xf32>
    %cst_41 = arith.constant dense<0.000000e+00> : vector<8x128xf32>
    %174 = tpu.matmul %172, %26, %cst_41 {dimension_numbers = #tpu.dot_dimension_numbers<[1], [0], [0], [1], [0, 0, 1, 1], [], []>} : vector<8x32xf32>, vector<32x128xf32>, vector<8x128xf32> -> vector<8x128xf32>
    %175 = arith.addf %173, %174 : vector<8x128xf32>
    %176 = arith.negf %175 : vector<8x128xf32>
    %177 = math.exp %176 : vector<8x128xf32>
    %cst_42 = arith.constant 1.000000e+00 : f32
    %178 = vector.broadcast %cst_42 : f32 to vector<8x128xf32>
    %179 = arith.addf %178, %177 : vector<8x128xf32>
    %180 = arith.divf %178, %179 : vector<8x128xf32>
    %181 = math.tanh %175 : vector<8x128xf32>
    %182 = vector.extract_strided_slice %180 {offsets = [0, 0], sizes = [8, 32], strides = [1, 1]} : vector<8x128xf32> to vector<8x32xf32>
    %183 = vector.extract_strided_slice %180 {offsets = [0, 32], sizes = [8, 32], strides = [1, 1]} : vector<8x128xf32> to vector<8x32xf32>
    %184 = vector.extract_strided_slice %181 {offsets = [0, 64], sizes = [8, 32], strides = [1, 1]} : vector<8x128xf32> to vector<8x32xf32>
    %185 = vector.extract_strided_slice %180 {offsets = [0, 96], sizes = [8, 32], strides = [1, 1]} : vector<8x128xf32> to vector<8x32xf32>
    %186 = arith.mulf %183, %170 : vector<8x32xf32>
    %187 = arith.mulf %182, %184 : vector<8x32xf32>
    %188 = arith.addf %186, %187 : vector<8x32xf32>
    %189 = math.tanh %188 : vector<8x32xf32>
    %190 = arith.mulf %185, %189 : vector<8x32xf32>
    %191 = vector.extract_strided_slice %25 {offsets = [72, 0], sizes = [8, 128], strides = [1, 1]} : vector<80x128xf32> to vector<8x128xf32>
    %cst_43 = arith.constant dense<0.000000e+00> : vector<8x128xf32>
    %192 = tpu.matmul %190, %26, %cst_43 {dimension_numbers = #tpu.dot_dimension_numbers<[1], [0], [0], [1], [0, 0, 1, 1], [], []>} : vector<8x32xf32>, vector<32x128xf32>, vector<8x128xf32> -> vector<8x128xf32>
    %193 = arith.addf %191, %192 : vector<8x128xf32>
    %194 = arith.negf %193 : vector<8x128xf32>
    %195 = math.exp %194 : vector<8x128xf32>
    %cst_44 = arith.constant 1.000000e+00 : f32
    %196 = vector.broadcast %cst_44 : f32 to vector<8x128xf32>
    %197 = arith.addf %196, %195 : vector<8x128xf32>
    %198 = arith.divf %196, %197 : vector<8x128xf32>
    %199 = math.tanh %193 : vector<8x128xf32>
    %200 = vector.extract_strided_slice %198 {offsets = [0, 0], sizes = [8, 32], strides = [1, 1]} : vector<8x128xf32> to vector<8x32xf32>
    %201 = vector.extract_strided_slice %198 {offsets = [0, 32], sizes = [8, 32], strides = [1, 1]} : vector<8x128xf32> to vector<8x32xf32>
    %202 = vector.extract_strided_slice %199 {offsets = [0, 64], sizes = [8, 32], strides = [1, 1]} : vector<8x128xf32> to vector<8x32xf32>
    %203 = vector.extract_strided_slice %198 {offsets = [0, 96], sizes = [8, 32], strides = [1, 1]} : vector<8x128xf32> to vector<8x32xf32>
    %204 = arith.mulf %201, %188 : vector<8x32xf32>
    %205 = arith.mulf %200, %202 : vector<8x32xf32>
    %206 = arith.addf %204, %205 : vector<8x32xf32>
    %207 = math.tanh %206 : vector<8x32xf32>
    %208 = arith.mulf %203, %207 : vector<8x32xf32>
    %c0_45 = arith.constant 0 : index
    %c0_46 = arith.constant 0 : index
    %209 = vector.load %arg6[%c0_45, %c0_46] : memref<32x128xf32, #tpu.memory_space<vmem>>, vector<32x128xf32>
    %cst_47 = arith.constant dense<0.000000e+00> : vector<8x128xf32>
    %210 = tpu.matmul %208, %209, %cst_47 {dimension_numbers = #tpu.dot_dimension_numbers<[1], [0], [0], [1], [0, 0, 1, 1], [], []>} : vector<8x32xf32>, vector<32x128xf32>, vector<8x128xf32> -> vector<8x128xf32>
    %c0_48 = arith.constant 0 : index
    %c0_49 = arith.constant 0 : index
    %211 = vector.load %arg7[%c0_48, %c0_49] : memref<1x128xf32, #tpu.memory_space<vmem>>, vector<1x128xf32>
    %212 = vector.broadcast %211 : vector<1x128xf32> to vector<8x128xf32>
    %213 = arith.addf %210, %212 : vector<8x128xf32>
    %c0_50 = arith.constant 0 : index
    %c0_51 = arith.constant 0 : index
    %214 = vector.load %arg8[%c0_50, %c0_51] : memref<8x128xf32, #tpu.memory_space<vmem>>, vector<8x128xf32>
    tpu.vector_store %arg8[%c0_50, %c0_51], %213 {strides = array<i32>} : memref<8x128xf32, #tpu.memory_space<vmem>>, vector<8x128xf32>,
    return
  }
}

</mosaic_0001>

<llo_original>
// kernel: cnn_lstm_forward.1
$region0: #{cnn_lstm_forward.1}
  #allocation0 [shape = 'u32[]', space=smem, size = 0x4, offset = 0x4, fixed_abs, tag = 'smem constant byte address 0x4 - core index']
  #allocation1 [shape = 'u32[144,128]{1,0:T(1,128)}', space=vmem, size = 0x12000, scoped, tag = 'internal scratch']
  %s0 = inlined_call_operand.vmem [shape: f32[96,16], index: 0, kind: input, shape index: {}]
  %s1 = inlined_call_operand.vmem [shape: f32[3,16,128], index: 1, kind: input, shape index: {}]
  %s2 = inlined_call_operand.vmem [shape: f32[1,128], index: 2, kind: input, shape index: {}]
  %s3 = inlined_call_operand.vmem [shape: f32[128,128], index: 3, kind: input, shape index: {}]
  %s4 = inlined_call_operand.vmem [shape: f32[32,128], index: 4, kind: input, shape index: {}]
  %s5 = inlined_call_operand.vmem [shape: f32[1,128], index: 5, kind: input, shape index: {}]
  %s6 = inlined_call_operand.vmem [shape: f32[32,128], index: 6, kind: input, shape index: {}]
  %s7 = inlined_call_operand.vmem [shape: f32[1,128], index: 7, kind: input, shape index: {}]
  %s8 = inlined_call_operand.vmem [shape: f32[8,128], index: 8, kind: output, shape index: {}]
  %s9 = sld [smem:[#allocation0]]
  $region42: #{cnn_lstm_forward.1} parent=0
    _
  %s11 = ssub.s32 1, %s9
  %s12 = scalar_select 0, %s11, %s9
  // Predicated region
  $region2: #{cnn_lstm_forward.1} parent=0 // pred_check
    _
  $region3: #{cnn_lstm_forward.1} parent=0 // pred_check_branch
    %14 = sbr.rel (0) target = $region5
  $region4: #{cnn_lstm_forward.1} parent=0 // pred_region
    _
  $region5: #{cnn_lstm_forward.1} parent=0 // pred_fallthru
    _
  // Predicated region
  $region6: #{cnn_lstm_forward.1} parent=0 // pred_check
    _
  $region7: #{cnn_lstm_forward.1} parent=0 // pred_check_branch
    %16 = sbr.rel (0) target = $region9
  $region8: #{cnn_lstm_forward.1} parent=0 // pred_region
    _
  $region9: #{cnn_lstm_forward.1} parent=0 // pred_fallthru
    _
  // Predicated region
  $region10: #{cnn_lstm_forward.1} parent=0 // pred_check
    _
  $region11: #{cnn_lstm_forward.1} parent=0 // pred_check_branch
    %18 = sbr.rel (0) target = $region13
  $region12: #{cnn_lstm_forward.1} parent=0 // pred_region
    _
  $region13: #{cnn_lstm_forward.1} parent=0 // pred_fallthru
    _
  // Predicated region
  $region14: #{cnn_lstm_forward.1} parent=0 // pred_check
    _
  $region15: #{cnn_lstm_forward.1} parent=0 // pred_check_branch
    %20 = sbr.rel (0) target = $region17
  $region16: #{cnn_lstm_forward.1} parent=0 // pred_region
    _
  $region17: #{cnn_lstm_forward.1} parent=0 // pred_fallthru
    _
  // Predicated region
  $region18: #{cnn_lstm_forward.1} parent=0 // pred_check
    _
  $region19: #{cnn_lstm_forward.1} parent=0 // pred_check_branch
    %22 = sbr.rel (0) target = $region21
  $region20: #{cnn_lstm_forward.1} parent=0 // pred_region
    _
  $region21: #{cnn_lstm_forward.1} parent=0 // pred_fallthru
    _
  // Predicated region
  $region22: #{cnn_lstm_forward.1} parent=0 // pred_check
    _
  $region23: #{cnn_lstm_forward.1} parent=0 // pred_check_branch
    %24 = sbr.rel (0) target = $region25
  $region24: #{cnn_lstm_forward.1} parent=0 // pred_region
    _
  $region25: #{cnn_lstm_forward.1} parent=0 // pred_fallthru
    _
  // Predicated region
  $region26: #{cnn_lstm_forward.1} parent=0 // pred_check
    _
  $region27: #{cnn_lstm_forward.1} parent=0 // pred_check_branch
    %26 = sbr.rel (0) target = $region29
  $region28: #{cnn_lstm_forward.1} parent=0 // pred_region
    _
  $region29: #{cnn_lstm_forward.1} parent=0 // pred_fallthru
    _
  // Predicated region
  $region30: #{cnn_lstm_forward.1} parent=0 // pred_check
    _
  $region31: #{cnn_lstm_forward.1} parent=0 // pred_check_branch
    %28 = sbr.rel (0) target = $region33
  $region32: #{cnn_lstm_forward.1} parent=0 // pred_region
    _
  $region33: #{cnn_lstm_forward.1} parent=0 // pred_fallthru
    _
  %v29 = vld [vmem:[%s0] sm:$0xff]
  %v30 = vld [vmem:[%s0 + $0x8] sm:$0xff]
  %v31 = vld [vmem:[%s0 + $0x10] sm:$0xff]
  %v32 = vld [vmem:[%s0 + $0x18] sm:$0xff]
  %v33 = vld [vmem:[%s0 + $0x20] sm:$0xff]
  %v34 = vld [vmem:[%s0 + $0x28] sm:$0xff]
  %v35 = vld [vmem:[%s0 + $0x30] sm:$0xff]
  %v36 = vld [vmem:[%s0 + $0x38] sm:$0xff]
  %v37 = vld [vmem:[%s0 + $0x40] sm:$0xff]
  %v38 = vld [vmem:[%s0 + $0x48] sm:$0xff]
  %v39 = vld [vmem:[%s1] sm:$0xff]
  %v40 = vld [vmem:[%s1 + $0x8] sm:$0xff]
  %v41 = vld [vmem:[%s0 + $0x50] sm:$0xff]
  %s42 = scalar_lea.vmem %s1, 16
  %v43 = vld [vmem:[%s42] sm:$0xff]
  %v44 = vld [vmem:[%s42 + $0x8] sm:$0xff]
  %vm45 = vcmask 130048
  %v47 = vsel %vm45, %v30, 0
  %v50 = vsel %vm45, %v31, 0
  %v53 = vsel %vm45, %v32, 0
  %v56 = vsel %vm45, %v33, 0
  %v59 = vsel %vm45, %v34, 0
  %v62 = vsel %vm45, %v35, 0
  %v65 = vsel %vm45, %v36, 0
  %v68 = vsel %vm45, %v37, 0
  %v71 = vsel %vm45, %v38, 0
  %v74 = vsel %vm45, %v41, 0
  %76 = vmatprep.subr.mxu0 0.0
  %77 = vmatpush1.msra.mxu0 0.0
  %78 = vmatprep.subr.mxu0 0.0
  %79 = vmatpush1.msra.mxu0 0.0
  %80 = vmatprep.subr.mxu0 0.0
  %81 = vmatpush1.msra.mxu0 0.0
  %82 = vmatprep.subr.mxu0 0.0
  %83 = vmatpush1.msra.mxu0 0.0
  %84 = vmatprep.subr.mxu0 0.0
  %85 = vmatpush1.msra.mxu0 0.0
  %86 = vmatprep.subr.mxu0 0.0
  %87 = vmatpush1.msra.mxu0 0.0
  %88 = vmatprep.subr.mxu0 0.0
  %89 = vmatpush1.msra.mxu0 0.0
  %90 = vmatprep.subr.mxu0 0.0
  %91 = vmatpush1.msra.mxu0 0.0
  %92 = vmatprep.subr.mxu0 0.0
  %93 = vmatpush1.msra.mxu0 0.0
  %94 = vmatprep.subr.mxu0 0.0
  %95 = vmatpush1.msra.mxu0 0.0
  %96 = vmatprep.subr.mxu0 0.0
  %97 = vmatpush1.msra.mxu0 0.0
  %98 = vmatprep.subr.mxu0 0.0
  %99 = vmatpush1.msra.mxu0 0.0
  %100 = vmatprep.subr.mxu0 0.0
  %101 = vmatpush1.msra.mxu0 0.0
  %102 = vmatprep.subr.mxu0 0.0
  %103 = vmatpush1.msra.mxu0 0.0
  %104 = vmatprep.subr.mxu0 0.0
  %105 = vmatpush1.msra.mxu0 %v44
  %106 = vmatprep.subr.mxu0 0.0
  %107 = vmatpush1.msra.mxu0 %v43
  %108 = vmatprep.subr.mxu0 0.0
  %109 = vmatpush2.msra.mxu0 0.0
  %110 = vmatprep.subr.mxu0 0.0
  %111 = vmatpush2.msra.mxu0 0.0
  %112 = vmatprep.subr.mxu0 0.0
  %113 = vmatpush2.msra.mxu0 0.0
  %114 = vmatprep.subr.mxu0 0.0
  %115 = vmatpush2.msra.mxu0 0.0
  %116 = vmatprep.subr.mxu0 0.0
  %117 = vmatpush2.msra.mxu0 0.0
  %118 = vmatprep.subr.mxu0 0.0
  %119 = vmatpush2.msra.mxu0 0.0
  %120 = vmatprep.subr.mxu0 0.0
  %121 = vmatpush2.msra.mxu0 0.0
  %122 = vmatprep.subr.mxu0 0.0
  %123 = vmatpush2.msra.mxu0 0.0
  %124 = vmatprep.subr.mxu0 0.0
  %125 = vmatpush2.msra.mxu0 0.0
  %126 = vmatprep.subr.mxu0 0.0
  %127 = vmatpush2.msra.mxu0 0.0
  %128 = vmatprep.subr.mxu0 0.0
  %129 = vmatpush2.msra.mxu0 0.0
  %130 = vmatprep.subr.mxu0 0.0
  %131 = vmatpush2.msra.mxu0 0.0
  %132 = vmatprep.subr.mxu0 0.0
  %133 = vmatpush2.msra.mxu0 0.0
  %134 = vmatprep.subr.mxu0 0.0
  %135 = vmatpush2.msra.mxu0 0.0
  %136 = vmatprep.subr.mxu0 0.0
  %137 = vmatpush2.msra.mxu0 0.0
  %138 = vmatprep.subr.mxu0 0.0
  %139 = vmatpush2.msra.mxu0 0.0
  %140 = vmatprep.mubr.f32.mxu0 0.0
  %141 = vmatmul.mubr.f32.gmra.mxu0 %v47
  %v142 = vpop.f32.mrf.mxu0
  %v143 = vadd.f32 0.0, %v142
  %v144 = vpop.f32.mrf.mxu0
  %145 = vmatprep.mubr.f32.mxu0 0.0
  %146 = vmatmul.mubr.f32.gmra.mxu0 %v50
  %v147 = vpop.f32.mrf.mxu0
  %v148 = vadd.f32 0.0, %v147
  %v149 = vpop.f32.mrf.mxu0
  %150 = vmatprep.mubr.f32.mxu0 0.0
  %151 = vmatmul.mubr.f32.gmra.mxu0 %v53
  %v152 = vpop.f32.mrf.mxu0
  %v153 = vadd.f32 0.0, %v152
  %v154 = vpop.f32.mrf.mxu0
  %155 = vmatprep.mubr.f32.mxu0 0.0
  %156 = vmatmul.mubr.f32.gmra.mxu0 %v56
  %v157 = vpop.f32.mrf.mxu0
  %v158 = vadd.f32 0.0, %v157
  %v159 = vpop.f32.mrf.mxu0
  %160 = vmatprep.mubr.f32.mxu0 0.0
  %161 = vmatmul.mubr.f32.gmra.mxu0 %v59
  %v162 = vpop.f32.mrf.mxu0
  %v163 = vadd.f32 0.0, %v162
  %v164 = vpop.f32.mrf.mxu0
  %165 = vmatprep.mubr.f32.mxu0 0.0
  %166 = vmatmul.mubr.f32.gmra.mxu0 %v62
  %v167 = vpop.f32.mrf.mxu0
  %v168 = vadd.f32 0.0, %v167
  %v169 = vpop.f32.mrf.mxu0
  %170 = vmatprep.mubr.f32.mxu0 0.0
  %171 = vmatmul.mubr.f32.gmra.mxu0 %v65
  %v172 = vpop.f32.mrf.mxu0
  %v173 = vadd.f32 0.0, %v172
  %v174 = vpop.f32.mrf.mxu0
  %175 = vmatprep.mubr.f32.mxu0 0.0
  %176 = vmatmul.mubr.f32.gmra.mxu0 %v68
  %v177 = vpop.f32.mrf.mxu0
  %v178 = vadd.f32 0.0, %v177
  %v179 = vpop.f32.mrf.mxu0
  %180 = vmatprep.mubr.f32.mxu0 0.0
  %181 = vmatmul.mubr.f32.gmra.mxu0 %v71
  %v182 = vpop.f32.mrf.mxu0
  %v183 = vadd.f32 0.0, %v182
  %v184 = vpop.f32.mrf.mxu0
  %185 = vmatprep.mubr.f32.mxu0 0.0
  %186 = vmatmul.mubr.f32.gmra.mxu0 %v74
  %v187 = vpop.f32.mrf.mxu0
  %v188 = vadd.f32 0.0, %v187
  %v189 = vpop.f32.mrf.mxu0
  %190 = vdwg.mxu0
  %v192 = vsel %vm45, %v29, 0
  %194 = vmatprep.subr.mxu0 0.0
  %195 = vmatpush1.msra.mxu0 0.0
  %196 = vmatprep.subr.mxu0 0.0
  %197 = vmatpush1.msra.mxu0 0.0
  %198 = vmatprep.subr.mxu0 0.0
  %199 = vmatpush1.msra.mxu0 0.0
  %200 = vmatprep.subr.mxu0 0.0
  %201 = vmatpush1.msra.mxu0 0.0
  %202 = vmatprep.subr.mxu0 0.0
  %203 = vmatpush1.msra.mxu0 0.0
  %204 = vmatprep.subr.mxu0 0.0
  %205 = vmatpush1.msra.mxu0 0.0
  %206 = vmatprep.subr.mxu0 0.0
  %207 = vmatpush1.msra.mxu0 0.0
  %208 = vmatprep.subr.mxu0 0.0
  %209 = vmatpush1.msra.mxu0 0.0
  %210 = vmatprep.subr.mxu0 0.0
  %211 = vmatpush1.msra.mxu0 0.0
  %212 = vmatprep.subr.mxu0 0.0
  %213 = vmatpush1.msra.mxu0 0.0
  %214 = vmatprep.subr.mxu0 0.0
  %215 = vmatpush1.msra.mxu0 0.0
  %216 = vmatprep.subr.mxu0 0.0
  %217 = vmatpush1.msra.mxu0 0.0
  %218 = vmatprep.subr.mxu0 0.0
  %219 = vmatpush1.msra.mxu0 0.0
  %220 = vmatprep.subr.mxu0 0.0
  %221 = vmatpush1.msra.mxu0 0.0
  %222 = vmatprep.subr.mxu0 0.0
  %223 = vmatpush1.msra.mxu0 %v40
  %224 = vmatprep.subr.mxu0 0.0
  %225 = vmatpush1.msra.mxu0 %v39
  %226 = vmatprep.subr.mxu0 0.0
  %227 = vmatpush2.msra.mxu0 0.0
  %228 = vmatprep.subr.mxu0 0.0
  %229 = vmatpush2.msra.mxu0 0.0
  %230 = vmatprep.subr.mxu0 0.0
  %231 = vmatpush2.msra.mxu0 0.0
  %232 = vmatprep.subr.mxu0 0.0
  %233 = vmatpush2.msra.mxu0 0.0
  %234 = vmatprep.subr.mxu0 0.0
  %235 = vmatpush2.msra.mxu0 0.0
  %236 = vmatprep.subr.mxu0 0.0
  %237 = vmatpush2.msra.mxu0 0.0
  %238 = vmatprep.subr.mxu0 0.0
  %239 = vmatpush2.msra.mxu0 0.0
  %240 = vmatprep.subr.mxu0 0.0
  %241 = vmatpush2.msra.mxu0 0.0
  %242 = vmatprep.subr.mxu0 0.0
  %243 = vmatpush2.msra.mxu0 0.0
  %244 = vmatprep.subr.mxu0 0.0
  %245 = vmatpush2.msra.mxu0 0.0
  %246 = vmatprep.subr.mxu0 0.0
  %247 = vmatpush2.msra.mxu0 0.0
  %248 = vmatprep.subr.mxu0 0.0
  %249 = vmatpush2.msra.mxu0 0.0
  %250 = vmatprep.subr.mxu0 0.0
  %251 = vmatpush2.msra.mxu0 0.0
  %252 = vmatprep.subr.mxu0 0.0
  %253 = vmatpush2.msra.mxu0 0.0
  %254 = vmatprep.subr.mxu0 0.0
  %255 = vmatpush2.msra.mxu0 0.0
  %256 = vmatprep.subr.mxu0 0.0
  %257 = vmatpush2.msra.mxu0 0.0
  %258 = vmatprep.mubr.f32.mxu0 0.0
  %259 = vmatmul.mubr.f32.gmra.mxu0 %v192
  %v260 = vpop.f32.mrf.mxu0
  %v261 = vadd.f32 %v143, %v260
  %v262 = vpop.f32.mrf.mxu0
  %263 = vmatprep.mubr.f32.mxu0 0.0
  %264 = vmatmul.mubr.f32.gmra.mxu0 %v47
  %v265 = vpop.f32.mrf.mxu0
  %v266 = vadd.f32 %v148, %v265
  %v267 = vpop.f32.mrf.mxu0
  %268 = vmatprep.mubr.f32.mxu0 0.0
  %269 = vmatmul.mubr.f32.gmra.mxu0 %v50
  %v270 = vpop.f32.mrf.mxu0
  %v271 = vadd.f32 %v153, %v270
  %v272 = vpop.f32.mrf.mxu0
  %273 = vmatprep.mubr.f32.mxu0 0.0
  %274 = vmatmul.mubr.f32.gmra.mxu0 %v53
  %v275 = vpop.f32.mrf.mxu0
  %v276 = vadd.f32 %v158, %v275
  %v277 = vpop.f32.mrf.mxu0
  %278 = vmatprep.mubr.f32.mxu0 0.0
  %279 = vmatmul.mubr.f32.gmra.mxu0 %v56
  %v280 = vpop.f32.mrf.mxu0
  %v281 = vadd.f32 %v163, %v280
  %v282 = vpop.f32.mrf.mxu0
  %283 = vmatprep.mubr.f32.mxu0 0.0
  %284 = vmatmul.mubr.f32.gmra.mxu0 %v59
  %v285 = vpop.f32.mrf.mxu0
  %v286 = vadd.f32 %v168, %v285
  %v287 = vpop.f32.mrf.mxu0
  %288 = vmatprep.mubr.f32.mxu0 0.0
  %289 = vmatmul.mubr.f32.gmra.mxu0 %v62
  %v290 = vpop.f32.mrf.mxu0
  %v291 = vadd.f32 %v173, %v290
  %v292 = vpop.f32.mrf.mxu0
  %293 = vmatprep.mubr.f32.mxu0 0.0
  %294 = vmatmul.mubr.f32.gmra.mxu0 %v65
  %v295 = vpop.f32.mrf.mxu0
  %v296 = vadd.f32 %v178, %v295
  %v297 = vpop.f32.mrf.mxu0
  %298 = vmatprep.mubr.f32.mxu0 0.0
  %299 = vmatmul.mubr.f32.gmra.mxu0 %v68
  %v300 = vpop.f32.mrf.mxu0
  %v301 = vadd.f32 %v183, %v300
  %v302 = vpop.f32.mrf.mxu0
  %303 = vmatprep.mubr.f32.mxu0 0.0
  %304 = vmatmul.mubr.f32.gmra.mxu0 %v71
  %v305 = vpop.f32.mrf.mxu0
  %v306 = vadd.f32 %v188, %v305
  %v307 = vpop.f32.mrf.mxu0
  %308 = vdwg.mxu0
  %v309 = vld [vmem:[%s0 + $0x10] sm:$0xff]
  %v310 = vld [vmem:[%s0 + $0x18] sm:$0xff]
  %v311 = vld [vmem:[%s0 + $0x20] sm:$0xff]
  %v312 = vld [vmem:[%s0 + $0x28] sm:$0xff]
  %v313 = vld [vmem:[%s0 + $0x30] sm:$0xff]
  %v314 = vld [vmem:[%s0 + $0x38] sm:$0xff]
  %v315 = vld [vmem:[%s0 + $0x40] sm:$0xff]
  %v316 = vld [vmem:[%s0 + $0x48] sm:$0xff]
  %v317 = vld [vmem:[%s0 + $0x50] sm:$0xff]
  %v318 = vld [vmem:[%s0 + $0x58] sm:$0xff]
  %s319 = scalar_lea.vmem %s1, 32
  %v320 = vld [vmem:[%s319] sm:$0xff]
  %v321 = vld [vmem:[%s319 + $0x8] sm:$0xff]
  %v323 = vsel %vm45, %v309, 0
  %v326 = vsel %vm45, %v310, 0
  %v329 = vsel %vm45, %v311, 0
  %v332 = vsel %vm45, %v312, 0
  %v335 = vsel %vm45, %v313, 0
  %v338 = vsel %vm45, %v314, 0
  %v341 = vsel %vm45, %v315, 0
  %v344 = vsel %vm45, %v316, 0
  %v347 = vsel %vm45, %v317, 0
  %v350 = vsel %vm45, %v318, 0
  %352 = vmatprep.subr.mxu0 0.0
  %353 = vmatpush1.msra.mxu0 0.0
  %354 = vmatprep.subr.mxu0 0.0
  %355 = vmatpush1.msra.mxu0 0.0
  %356 = vmatprep.subr.mxu0 0.0
  %357 = vmatpush1.msra.mxu0 0.0
  %358 = vmatprep.subr.mxu0 0.0
  %359 = vmatpush1.msra.mxu0 0.0
  %360 = vmatprep.subr.mxu0 0.0
  %361 = vmatpush1.msra.mxu0 0.0
  %362 = vmatprep.subr.mxu0 0.0
  %363 = vmatpush1.msra.mxu0 0.0
  %364 = vmatprep.subr.mxu0 0.0
  %365 = vmatpush1.msra.mxu0 0.0
  %366 = vmatprep.subr.mxu0 0.0
  %367 = vmatpush1.msra.mxu0 0.0
  %368 = vmatprep.subr.mxu0 0.0
  %369 = vmatpush1.msra.mxu0 0.0
  %370 = vmatprep.subr.mxu0 0.0
  %371 = vmatpush1.msra.mxu0 0.0
  %372 = vmatprep.subr.mxu0 0.0
  %373 = vmatpush1.msra.mxu0 0.0
  %374 = vmatprep.subr.mxu0 0.0
  %375 = vmatpush1.msra.mxu0 0.0
  %376 = vmatprep.subr.mxu0 0.0
  %377 = vmatpush1.msra.mxu0 0.0
  %378 = vmatprep.subr.mxu0 0.0
  %379 = vmatpush1.msra.mxu0 0.0
  %380 = vmatprep.subr.mxu0 0.0
  %381 = vmatpush1.msra.mxu0 %v321
  %382 = vmatprep.subr.mxu0 0.0
  %383 = vmatpush1.msra.mxu0 %v320
  %384 = vmatprep.subr.mxu0 0.0
  %385 = vmatpush2.msra.mxu0 0.0
  %386 = vmatprep.subr.mxu0 0.0
  %387 = vmatpush2.msra.mxu0 0.0
  %388 = vmatprep.subr.mxu0 0.0
  %389 = vmatpush2.msra.mxu0 0.0
  %390 = vmatprep.subr.mxu0 0.0
  %391 = vmatpush2.msra.mxu0 0.0
  %392 = vmatprep.subr.mxu0 0.0
  %393 = vmatpush2.msra.mxu0 0.0
  %394 = vmatprep.subr.mxu0 0.0
  %395 = vmatpush2.msra.mxu0 0.0
  %396 = vmatprep.subr.mxu0 0.0
  %397 = vmatpush2.msra.mxu0 0.0
  %398 = vmatprep.subr.mxu0 0.0
  %399 = vmatpush2.msra.mxu0 0.0
  %400 = vmatprep.subr.mxu0 0.0
  %401 = vmatpush2.msra.mxu0 0.0
  %402 = vmatprep.subr.mxu0 0.0
  %403 = vmatpush2.msra.mxu0 0.0
  %404 = vmatprep.subr.mxu0 0.0
  %405 = vmatpush2.msra.mxu0 0.0
  %406 = vmatprep.subr.mxu0 0.0
  %407 = vmatpush2.msra.mxu0 0.0
  %408 = vmatprep.subr.mxu0 0.0
  %409 = vmatpush2.msra.mxu0 0.0
  %410 = vmatprep.subr.mxu0 0.0
  %411 = vmatpush2.msra.mxu0 0.0
  %412 = vmatprep.subr.mxu0 0.0
  %413 = vmatpush2.msra.mxu0 0.0
  %414 = vmatprep.subr.mxu0 0.0
  %415 = vmatpush2.msra.mxu0 0.0
  %416 = vmatprep.mubr.f32.mxu0 0.0
  %417 = vmatmul.mubr.f32.gmra.mxu0 %v323
  %v418 = vpop.f32.mrf.mxu0
  %v419 = vadd.f32 0.0, %v418
  %v420 = vpop.f32.mrf.mxu0
  %421 = vmatprep.mubr.f32.mxu0 0.0
  %422 = vmatmul.mubr.f32.gmra.mxu0 %v326
  %v423 = vpop.f32.mrf.mxu0
  %v424 = vadd.f32 0.0, %v423
  %v425 = vpop.f32.mrf.mxu0
  %426 = vmatprep.mubr.f32.mxu0 0.0
  %427 = vmatmul.mubr.f32.gmra.mxu0 %v329
  %v428 = vpop.f32.mrf.mxu0
  %v429 = vadd.f32 0.0, %v428
  %v430 = vpop.f32.mrf.mxu0
  %431 = vmatprep.mubr.f32.mxu0 0.0
  %432 = vmatmul.mubr.f32.gmra.mxu0 %v332
  %v433 = vpop.f32.mrf.mxu0
  %v434 = vadd.f32 0.0, %v433
  %v435 = vpop.f32.mrf.mxu0
  %436 = vmatprep.mubr.f32.mxu0 0.0
  %437 = vmatmul.mubr.f32.gmra.mxu0 %v335
  %v438 = vpop.f32.mrf.mxu0
  %v439 = vadd.f32 0.0, %v438
  %v440 = vpop.f32.mrf.mxu0
  %441 = vmatprep.mubr.f32.mxu0 0.0
  %442 = vmatmul.mubr.f32.gmra.mxu0 %v338
  %v443 = vpop.f32.mrf.mxu0
  %v444 = vadd.f32 0.0, %v443
  %v445 = vpop.f32.mrf.mxu0
  %446 = vmatprep.mubr.f32.mxu0 0.0
  %447 = vmatmul.mubr.f32.gmra.mxu0 %v341
  %v448 = vpop.f32.mrf.mxu0
  %v449 = vadd.f32 0.0, %v448
  %v450 = vpop.f32.mrf.mxu0
  %451 = vmatprep.mubr.f32.mxu0 0.0
  %452 = vmatmul.mubr.f32.gmra.mxu0 %v344
  %v453 = vpop.f32.mrf.mxu0
  %v454 = vadd.f32 0.0, %v453
  %v455 = vpop.f32.mrf.mxu0
  %456 = vmatprep.mubr.f32.mxu0 0.0
  %457 = vmatmul.mubr.f32.gmra.mxu0 %v347
  %v458 = vpop.f32.mrf.mxu0
  %v459 = vadd.f32 0.0, %v458
  %v460 = vpop.f32.mrf.mxu0
  %461 = vmatprep.mubr.f32.mxu0 0.0
  %462 = vmatmul.mubr.f32.gmra.mxu0 %v350
  %v463 = vpop.f32.mrf.mxu0
  %v464 = vadd.f32 0.0, %v463
  %v465 = vpop.f32.mrf.mxu0
  %466 = vdwg.mxu0
  %v467 = vadd.f32 %v261, %v419
  %v468 = vadd.f32 %v266, %v424
  %v469 = vadd.f32 %v271, %v429
  %v470 = vadd.f32 %v276, %v434
  %v471 = vadd.f32 %v281, %v439
  %v472 = vadd.f32 %v286, %v444
  %v473 = vadd.f32 %v291, %v449
  %v474 = vadd.f32 %v296, %v454
  %v475 = vadd.f32 %v301, %v459
  %v476 = vadd.f32 %v306, %v464
  %v477 = vld [vmem:[%s2] sm:$0x1]
  %v479 = vlaneseq
  %v480 = vshrl.u32 %v479, 7
  %v481 = vsub.s32 0, %v480
  %v482 = vrot.slane %v477, %v481
  %v484 = vadd.f32 %v467, %v482
  %v485 = vadd.f32 %v468, %v482
  %v486 = vadd.f32 %v469, %v482
  %v487 = vadd.f32 %v470, %v482
  %v488 = vadd.f32 %v471, %v482
  %v489 = vadd.f32 %v472, %v482
  %v490 = vadd.f32 %v473, %v482
  %v491 = vadd.f32 %v474, %v482
  %v492 = vadd.f32 %v475, %v482
  %v493 = vadd.f32 %v476, %v482
  %v494 = vmax.f32 %v484, 0.0
  %v495 = vmax.f32 %v485, 0.0
  %v496 = vmax.f32 %v486, 0.0
  %v497 = vmax.f32 %v487, 0.0
  %v498 = vmax.f32 %v488, 0.0
  %v499 = vmax.f32 %v489, 0.0
  %v500 = vmax.f32 %v490, 0.0
  %v501 = vmax.f32 %v491, 0.0
  %v502 = vmax.f32 %v492, 0.0
  %v503 = vmax.f32 %v493, 0.0
  %v504 = vld [vmem:[%s3] sm:$0xff]
  %v505 = vld [vmem:[%s3 + $0x8] sm:$0xff]
  %v506 = vld [vmem:[%s3 + $0x10] sm:$0xff]
  %v507 = vld [vmem:[%s3 + $0x18] sm:$0xff]
  %v508 = vld [vmem:[%s3 + $0x20] sm:$0xff]
  %v509 = vld [vmem:[%s3 + $0x28] sm:$0xff]
  %v510 = vld [vmem:[%s3 + $0x30] sm:$0xff]
  %v511 = vld [vmem:[%s3 + $0x38] sm:$0xff]
  %v512 = vld [vmem:[%s3 + $0x40] sm:$0xff]
  %v513 = vld [vmem:[%s3 + $0x48] sm:$0xff]
  %v514 = vld [vmem:[%s3 + $0x50] sm:$0xff]
  %v515 = vld [vmem:[%s3 + $0x58] sm:$0xff]
  %v516 = vld [vmem:[%s3 + $0x60] sm:$0xff]
  %v517 = vld [vmem:[%s3 + $0x68] sm:$0xff]
  %v518 = vld [vmem:[%s3 + $0x70] sm:$0xff]
  %v519 = vld [vmem:[%s3 + $0x78] sm:$0xff]
  %v520 = vld [vmem:[%s5] sm:$0x1]
  %v522 = vlaneseq
  %v523 = vshrl.u32 %v522, 7
  %v524 = vsub.s32 0, %v523
  %v525 = vrot.slane %v520, %v524
  %527 = vmatprep.subr.mxu0 0.0
  %528 = vmatpush1.msra.mxu0 %v519
  %529 = vmatprep.subr.mxu0 0.0
  %530 = vmatpush1.msra.mxu0 %v518
  %531 = vmatprep.subr.mxu0 0.0
  %532 = vmatpush1.msra.mxu0 %v517
  %533 = vmatprep.subr.mxu0 0.0
  %534 = vmatpush1.msra.mxu0 %v516
  %535 = vmatprep.subr.mxu0 0.0
  %536 = vmatpush1.msra.mxu0 %v515
  %537 = vmatprep.subr.mxu0 0.0
  %538 = vmatpush1.msra.mxu0 %v514
  %539 = vmatprep.subr.mxu0 0.0
  %540 = vmatpush1.msra.mxu0 %v513
  %541 = vmatprep.subr.mxu0 0.0
  %542 = vmatpush1.msra.mxu0 %v512
  %543 = vmatprep.subr.mxu0 0.0
  %544 = vmatpush1.msra.mxu0 %v511
  %545 = vmatprep.subr.mxu0 0.0
  %546 = vmatpush1.msra.mxu0 %v510
  %547 = vmatprep.subr.mxu0 0.0
  %548 = vmatpush1.msra.mxu0 %v509
  %549 = vmatprep.subr.mxu0 0.0
  %550 = vmatpush1.msra.mxu0 %v508
  %551 = vmatprep.subr.mxu0 0.0
  %552 = vmatpush1.msra.mxu0 %v507
  %553 = vmatprep.subr.mxu0 0.0
  %554 = vmatpush1.msra.mxu0 %v506
  %555 = vmatprep.subr.mxu0 0.0
  %556 = vmatpush1.msra.mxu0 %v505
  %557 = vmatprep.subr.mxu0 0.0
  %558 = vmatpush1.msra.mxu0 %v504
  %559 = vmatprep.subr.mxu0 0.0
  %560 = vmatpush2.msra.mxu0 0.0
  %561 = vmatprep.subr.mxu0 0.0
  %562 = vmatpush2.msra.mxu0 0.0
  %563 = vmatprep.subr.mxu0 0.0
  %564 = vmatpush2.msra.mxu0 0.0
  %565 = vmatprep.subr.mxu0 0.0
  %566 = vmatpush2.msra.mxu0 0.0
  %567 = vmatprep.subr.mxu0 0.0
  %568 = vmatpush2.msra.mxu0 0.0
  %569 = vmatprep.subr.mxu0 0.0
  %570 = vmatpush2.msra.mxu0 0.0
  %571 = vmatprep.subr.mxu0 0.0
  %572 = vmatpush2.msra.mxu0 0.0
  %573 = vmatprep.subr.mxu0 0.0
  %574 = vmatpush2.msra.mxu0 0.0
  %575 = vmatprep.subr.mxu0 0.0
  %576 = vmatpush2.msra.mxu0 0.0
  %577 = vmatprep.subr.mxu0 0.0
  %578 = vmatpush2.msra.mxu0 0.0
  %579 = vmatprep.subr.mxu0 0.0
  %580 = vmatpush2.msra.mxu0 0.0
  %581 = vmatprep.subr.mxu0 0.0
  %582 = vmatpush2.msra.mxu0 0.0
  %583 = vmatprep.subr.mxu0 0.0
  %584 = vmatpush2.msra.mxu0 0.0
  %585 = vmatprep.subr.mxu0 0.0
  %586 = vmatpush2.msra.mxu0 0.0
  %587 = vmatprep.subr.mxu0 0.0
  %588 = vmatpush2.msra.mxu0 0.0
  %589 = vmatprep.subr.mxu0 0.0
  %590 = vmatpush2.msra.mxu0 0.0
  %591 = vmatprep.mubr.f32.mxu0 0.0
  %592 = vmatmul.mubr.f32.gmra.mxu0 %v494
  %v593 = vpop.f32.mrf.mxu0
  %v594 = vadd.f32 %v525, %v593
  %v595 = vpop.f32.mrf.mxu0
  %596 = vmatprep.mubr.f32.mxu0 0.0
  %597 = vmatmul.mubr.f32.gmra.mxu0 %v495
  %v598 = vpop.f32.mrf.mxu0
  %v599 = vadd.f32 %v525, %v598
  %v600 = vpop.f32.mrf.mxu0
  %601 = vmatprep.mubr.f32.mxu0 0.0
  %602 = vmatmul.mubr.f32.gmra.mxu0 %v496
  %v603 = vpop.f32.mrf.mxu0
  %v604 = vadd.f32 %v525, %v603
  %v605 = vpop.f32.mrf.mxu0
  %606 = vmatprep.mubr.f32.mxu0 0.0
  %607 = vmatmul.mubr.f32.gmra.mxu0 %v497
  %v608 = vpop.f32.mrf.mxu0
  %v609 = vadd.f32 %v525, %v608
  %v610 = vpop.f32.mrf.mxu0
  %611 = vmatprep.mubr.f32.mxu0 0.0
  %612 = vmatmul.mubr.f32.gmra.mxu0 %v498
  %v613 = vpop.f32.mrf.mxu0
  %v614 = vadd.f32 %v525, %v613
  %v615 = vpop.f32.mrf.mxu0
  %616 = vmatprep.mubr.f32.mxu0 0.0
  %617 = vmatmul.mubr.f32.gmra.mxu0 %v499
  %v618 = vpop.f32.mrf.mxu0
  %v619 = vadd.f32 %v525, %v618
  %v620 = vpop.f32.mrf.mxu0
  %621 = vmatprep.mubr.f32.mxu0 0.0
  %622 = vmatmul.mubr.f32.gmra.mxu0 %v500
  %v623 = vpop.f32.mrf.mxu0
  %v624 = vadd.f32 %v525, %v623
  %v625 = vpop.f32.mrf.mxu0
  %626 = vmatprep.mubr.f32.mxu0 0.0
  %627 = vmatmul.mubr.f32.gmra.mxu0 %v501
  %v628 = vpop.f32.mrf.mxu0
  %v629 = vadd.f32 %v525, %v628
  %v630 = vpop.f32.mrf.mxu0
  %631 = vmatprep.mubr.f32.mxu0 0.0
  %632 = vmatmul.mubr.f32.gmra.mxu0 %v502
  %v633 = vpop.f32.mrf.mxu0
  %v634 = vadd.f32 %v525, %v633
  %v635 = vpop.f32.mrf.mxu0
  %636 = vmatprep.mubr.f32.mxu0 0.0
  %637 = vmatmul.mubr.f32.gmra.mxu0 %v503
  %v638 = vpop.f32.mrf.mxu0
  %v639 = vadd.f32 %v525, %v638
  %v640 = vpop.f32.mrf.mxu0
  %641 = vdwg.mxu0
  %v642 = vld [vmem:[%s4] sm:$0xff]
  %v643 = vld [vmem:[%s4 + $0x8] sm:$0xff]
  %v644 = vld [vmem:[%s4 + $0x10] sm:$0xff]
  %v645 = vld [vmem:[%s4 + $0x18] sm:$0xff]
  %vm646 = vcmask 261120
  %v648 = vsel %vm646, 0.0, 0
  %650 = vmatprep.subr.mxu0 0.0
  %651 = vmatpush1.msra.mxu0 0.0
  %652 = vmatprep.subr.mxu0 0.0
  %653 = vmatpush1.msra.mxu0 0.0
  %654 = vmatprep.subr.mxu0 0.0
  %655 = vmatpush1.msra.mxu0 0.0
  %656 = vmatprep.subr.mxu0 0.0
  %657 = vmatpush1.msra.mxu0 0.0
  %658 = vmatprep.subr.mxu0 0.0
  %659 = vmatpush1.msra.mxu0 0.0
  %660 = vmatprep.subr.mxu0 0.0
  %661 = vmatpush1.msra.mxu0 0.0
  %662 = vmatprep.subr.mxu0 0.0
  %663 = vmatpush1.msra.mxu0 0.0
  %664 = vmatprep.subr.mxu0 0.0
  %665 = vmatpush1.msra.mxu0 0.0
  %666 = vmatprep.subr.mxu0 0.0
  %667 = vmatpush1.msra.mxu0 0.0
  %668 = vmatprep.subr.mxu0 0.0
  %669 = vmatpush1.msra.mxu0 0.0
  %670 = vmatprep.subr.mxu0 0.0
  %671 = vmatpush1.msra.mxu0 0.0
  %672 = vmatprep.subr.mxu0 0.0
  %673 = vmatpush1.msra.mxu0 0.0
  %674 = vmatprep.subr.mxu0 0.0
  %675 = vmatpush1.msra.mxu0 %v645
  %676 = vmatprep.subr.mxu0 0.0
  %677 = vmatpush1.msra.mxu0 %v644
  %678 = vmatprep.subr.mxu0 0.0
  %679 = vmatpush1.msra.mxu0 %v643
  %680 = vmatprep.subr.mxu0 0.0
  %681 = vmatpush1.msra.mxu0 %v642
  %682 = vmatprep.subr.mxu0 0.0
  %683 = vmatpush2.msra.mxu0 0.0
  %684 = vmatprep.subr.mxu0 0.0
  %685 = vmatpush2.msra.mxu0 0.0
  %686 = vmatprep.subr.mxu0 0.0
  %687 = vmatpush2.msra.mxu0 0.0
  %688 = vmatprep.subr.mxu0 0.0
  %689 = vmatpush2.msra.mxu0 0.0
  %690 = vmatprep.subr.mxu0 0.0
  %691 = vmatpush2.msra.mxu0 0.0
  %692 = vmatprep.subr.mxu0 0.0
  %693 = vmatpush2.msra.mxu0 0.0
  %694 = vmatprep.subr.mxu0 0.0
  %695 = vmatpush2.msra.mxu0 0.0
  %696 = vmatprep.subr.mxu0 0.0
  %697 = vmatpush2.msra.mxu0 0.0
  %698 = vmatprep.subr.mxu0 0.0
  %699 = vmatpush2.msra.mxu0 0.0
  %700 = vmatprep.subr.mxu0 0.0
  %701 = vmatpush2.msra.mxu0 0.0
  %702 = vmatprep.subr.mxu0 0.0
  %703 = vmatpush2.msra.mxu0 0.0
  %704 = vmatprep.subr.mxu0 0.0
  %705 = vmatpush2.msra.mxu0 0.0
  %706 = vmatprep.subr.mxu0 0.0
  %707 = vmatpush2.msra.mxu0 0.0
  %708 = vmatprep.subr.mxu0 0.0
  %709 = vmatpush2.msra.mxu0 0.0
  %710 = vmatprep.subr.mxu0 0.0
  %711 = vmatpush2.msra.mxu0 0.0
  %712 = vmatprep.subr.mxu0 0.0
  %713 = vmatpush2.msra.mxu0 0.0
  %714 = vmatprep.mubr.f32.mxu0 0.0
  %715 = vmatmul.mubr.f32.gmra.mxu0 %v648
  %v716 = vpop.f32.mrf.mxu0
  %v717 = vadd.f32 0.0, %v716
  %v718 = vpop.f32.mrf.mxu0
  %719 = vdwg.mxu0
  %v720 = vadd.f32 %v594, %v717
  %v721 = vxor.u32 %v720, 2147483648
  %v722 = vmul.f32 %v721, 1.442695
  %v723 = vpow.pop %v722
  %v724 = vadd.f32 %v723, 1.0
  %v725 = vrcp.pop %v724
  %v726 = vmul.f32 1.0, %v725
  %v727 = vtanh.pop %v720
  %v728 = vmul.f32 %v726, 0.0
  %730 = vrot.lane.b32.xlu0 %v727, 64
  %v731 = vpop.permute.xlu0 %730
  %v733 = vmul.f32 %v726, %v731
  %735 = vrot.lane.b32.xlu0 %v733, 32
  %v736 = vpop.permute.xlu0 %735
  %v738 = vadd.f32 %v728, %v736
  %v739 = vtanh.pop %v738
  %741 = vrot.lane.b32.xlu0 %v739, 64
  %v742 = vpop.permute.xlu0 %741
  %v744 = vmul.f32 %v726, %v742
  %746 = vrot.lane.b32.xlu0 %v744, 32
  %v747 = vpop.permute.xlu0 %746
  %v748 = vsel %vm646, %v747, 0
  %750 = vmatprep.subr.mxu0 0.0
  %751 = vmatpush1.msra.mxu0 0.0
  %752 = vmatprep.subr.mxu0 0.0
  %753 = vmatpush1.msra.mxu0 0.0
  %754 = vmatprep.subr.mxu0 0.0
  %755 = vmatpush1.msra.mxu0 0.0
  %756 = vmatprep.subr.mxu0 0.0
  %757 = vmatpush1.msra.mxu0 0.0
  %758 = vmatprep.subr.mxu0 0.0
  %759 = vmatpush1.msra.mxu0 0.0
  %760 = vmatprep.subr.mxu0 0.0
  %761 = vmatpush1.msra.mxu0 0.0
  %762 = vmatprep.subr.mxu0 0.0
  %763 = vmatpush1.msra.mxu0 0.0
  %764 = vmatprep.subr.mxu0 0.0
  %765 = vmatpush1.msra.mxu0 0.0
  %766 = vmatprep.subr.mxu0 0.0
  %767 = vmatpush1.msra.mxu0 0.0
  %768 = vmatprep.subr.mxu0 0.0
  %769 = vmatpush1.msra.mxu0 0.0
  %770 = vmatprep.subr.mxu0 0.0
  %771 = vmatpush1.msra.mxu0 0.0
  %772 = vmatprep.subr.mxu0 0.0
  %773 = vmatpush1.msra.mxu0 0.0
  %774 = vmatprep.subr.mxu0 0.0
  %775 = vmatpush1.msra.mxu0 %v645
  %776 = vmatprep.subr.mxu0 0.0
  %777 = vmatpush1.msra.mxu0 %v644
  %778 = vmatprep.subr.mxu0 0.0
  %779 = vmatpush1.msra.mxu0 %v643
  %780 = vmatprep.subr.mxu0 0.0
  %781 = vmatpush1.msra.mxu0 %v642
  %782 = vmatprep.subr.mxu0 0.0
  %783 = vmatpush2.msra.mxu0 0.0
  %784 = vmatprep.subr.mxu0 0.0
  %785 = vmatpush2.msra.mxu0 0.0
  %786 = vmatprep.subr.mxu0 0.0
  %787 = vmatpush2.msra.mxu0 0.0
  %788 = vmatprep.subr.mxu0 0.0
  %789 = vmatpush2.msra.mxu0 0.0
  %790 = vmatprep.subr.mxu0 0.0
  %791 = vmatpush2.msra.mxu0 0.0
  %792 = vmatprep.subr.mxu0 0.0
  %793 = vmatpush2.msra.mxu0 0.0
  %794 = vmatprep.subr.mxu0 0.0
  %795 = vmatpush2.msra.mxu0 0.0
  %796 = vmatprep.subr.mxu0 0.0
  %797 = vmatpush2.msra.mxu0 0.0
  %798 = vmatprep.subr.mxu0 0.0
  %799 = vmatpush2.msra.mxu0 0.0
  %800 = vmatprep.subr.mxu0 0.0
  %801 = vmatpush2.msra.mxu0 0.0
  %802 = vmatprep.subr.mxu0 0.0
  %803 = vmatpush2.msra.mxu0 0.0
  %804 = vmatprep.subr.mxu0 0.0
  %805 = vmatpush2.msra.mxu0 0.0
  %806 = vmatprep.subr.mxu0 0.0
  %807 = vmatpush2.msra.mxu0 0.0
  %808 = vmatprep.subr.mxu0 0.0
  %809 = vmatpush2.msra.mxu0 0.0
  %810 = vmatprep.subr.mxu0 0.0
  %811 = vmatpush2.msra.mxu0 0.0
  %812 = vmatprep.subr.mxu0 0.0
  %813 = vmatpush2.msra.mxu0 0.0
  %814 = vmatprep.mubr.f32.mxu0 0.0
  %815 = vmatmul.mubr.f32.gmra.mxu0 %v748
  %v816 = vpop.f32.mrf.mxu0
  %v817 = vadd.f32 0.0, %v816
  %v818 = vpop.f32.mrf.mxu0
  %819 = vdwg.mxu0
  %v820 = vadd.f32 %v599, %v817
  %v821 = vxor.u32 %v820, 2147483648
  %v822 = vmul.f32 %v821, 1.442695
  %v823 = vpow.pop %v822
  %v824 = vadd.f32 %v823, 1.0
  %v825 = vrcp.pop %v824
  %v826 = vmul.f32 1.0, %v825
  %v827 = vtanh.pop %v820
  %v828 = vmul.f32 %v826, %v738
  %830 = vrot.lane.b32.xlu0 %v827, 64
  %v831 = vpop.permute.xlu0 %830
  %v833 = vmul.f32 %v826, %v831
  %835 = vrot.lane.b32.xlu0 %v833, 32
  %v836 = vpop.permute.xlu0 %835
  %v838 = vadd.f32 %v828, %v836
  %v839 = vtanh.pop %v838
  %841 = vrot.lane.b32.xlu0 %v839, 64
  %v842 = vpop.permute.xlu0 %841
  %v844 = vmul.f32 %v826, %v842
  %846 = vrot.lane.b32.xlu0 %v844, 32
  %v847 = vpop.permute.xlu0 %846
  %v848 = vsel %vm646, %v847, 0
  %850 = vmatprep.subr.mxu0 0.0
  %851 = vmatpush1.msra.mxu0 0.0
  %852 = vmatprep.subr.mxu0 0.0
  %853 = vmatpush1.msra.mxu0 0.0
  %854 = vmatprep.subr.mxu0 0.0
  %855 = vmatpush1.msra.mxu0 0.0
  %856 = vmatprep.subr.mxu0 0.0
  %857 = vmatpush1.msra.mxu0 0.0
  %858 = vmatprep.subr.mxu0 0.0
  %859 = vmatpush1.msra.mxu0 0.0
  %860 = vmatprep.subr.mxu0 0.0
  %861 = vmatpush1.msra.mxu0 0.0
  %862 = vmatprep.subr.mxu0 0.0
  %863 = vmatpush1.msra.mxu0 0.0
  %864 = vmatprep.subr.mxu0 0.0
  %865 = vmatpush1.msra.mxu0 0.0
  %866 = vmatprep.subr.mxu0 0.0
  %867 = vmatpush1.msra.mxu0 0.0
  %868 = vmatprep.subr.mxu0 0.0
  %869 = vmatpush1.msra.mxu0 0.0
  %870 = vmatprep.subr.mxu0 0.0
  %871 = vmatpush1.msra.mxu0 0.0
  %872 = vmatprep.subr.mxu0 0.0
  %873 = vmatpush1.msra.mxu0 0.0
  %874 = vmatprep.subr.mxu0 0.0
  %875 = vmatpush1.msra.mxu0 %v645
  %876 = vmatprep.subr.mxu0 0.0
  %877 = vmatpush1.msra.mxu0 %v644
  %878 = vmatprep.subr.mxu0 0.0
  %879 = vmatpush1.msra.mxu0 %v643
  %880 = vmatprep.subr.mxu0 0.0
  %881 = vmatpush1.msra.mxu0 %v642
  %882 = vmatprep.subr.mxu0 0.0
  %883 = vmatpush2.msra.mxu0 0.0
  %884 = vmatprep.subr.mxu0 0.0
  %885 = vmatpush2.msra.mxu0 0.0
  %886 = vmatprep.subr.mxu0 0.0
  %887 = vmatpush2.msra.mxu0 0.0
  %888 = vmatprep.subr.mxu0 0.0
  %889 = vmatpush2.msra.mxu0 0.0
  %890 = vmatprep.subr.mxu0 0.0
  %891 = vmatpush2.msra.mxu0 0.0
  %892 = vmatprep.subr.mxu0 0.0
  %893 = vmatpush2.msra.mxu0 0.0
  %894 = vmatprep.subr.mxu0 0.0
  %895 = vmatpush2.msra.mxu0 0.0
  %896 = vmatprep.subr.mxu0 0.0
  %897 = vmatpush2.msra.mxu0 0.0
  %898 = vmatprep.subr.mxu0 0.0
  %899 = vmatpush2.msra.mxu0 0.0
  %900 = vmatprep.subr.mxu0 0.0
  %901 = vmatpush2.msra.mxu0 0.0
  %902 = vmatprep.subr.mxu0 0.0
  %903 = vmatpush2.msra.mxu0 0.0
  %904 = vmatprep.subr.mxu0 0.0
  %905 = vmatpush2.msra.mxu0 0.0
  %906 = vmatprep.subr.mxu0 0.0
  %907 = vmatpush2.msra.mxu0 0.0
  %908 = vmatprep.subr.mxu0 0.0
  %909 = vmatpush2.msra.mxu0 0.0
  %910 = vmatprep.subr.mxu0 0.0
  %911 = vmatpush2.msra.mxu0 0.0
  %912 = vmatprep.subr.mxu0 0.0
  %913 = vmatpush2.msra.mxu0 0.0
  %914 = vmatprep.mubr.f32.mxu0 0.0
  %915 = vmatmul.mubr.f32.gmra.mxu0 %v848
  %v916 = vpop.f32.mrf.mxu0
  %v917 = vadd.f32 0.0, %v916
  %v918 = vpop.f32.mrf.mxu0
  %919 = vdwg.mxu0
  %v920 = vadd.f32 %v604, %v917
  %v921 = vxor.u32 %v920, 2147483648
  %v922 = vmul.f32 %v921, 1.442695
  %v923 = vpow.pop %v922
  %v924 = vadd.f32 %v923, 1.0
  %v925 = vrcp.pop %v924
  %v926 = vmul.f32 1.0, %v925
  %v927 = vtanh.pop %v920
  %v928 = vmul.f32 %v926, %v838
  %930 = vrot.lane.b32.xlu0 %v927, 64
  %v931 = vpop.permute.xlu0 %930
  %v933 = vmul.f32 %v926, %v931
  %935 = vrot.lane.b32.xlu0 %v933, 32
  %v936 = vpop.permute.xlu0 %935
  %v938 = vadd.f32 %v928, %v936
  %v939 = vtanh.pop %v938
  %941 = vrot.lane.b32.xlu0 %v939, 64
  %v942 = vpop.permute.xlu0 %941
  %v944 = vmul.f32 %v926, %v942
  %946 = vrot.lane.b32.xlu0 %v944, 32
  %v947 = vpop.permute.xlu0 %946
  %v948 = vsel %vm646, %v947, 0
  %950 = vmatprep.subr.mxu0 0.0
  %951 = vmatpush1.msra.mxu0 0.0
  %952 = vmatprep.subr.mxu0 0.0
  %953 = vmatpush1.msra.mxu0 0.0
  %954 = vmatprep.subr.mxu0 0.0
  %955 = vmatpush1.msra.mxu0 0.0
  %956 = vmatprep.subr.mxu0 0.0
  %957 = vmatpush1.msra.mxu0 0.0
  %958 = vmatprep.subr.mxu0 0.0
  %959 = vmatpush1.msra.mxu0 0.0
  %960 = vmatprep.subr.mxu0 0.0
  %961 = vmatpush1.msra.mxu0 0.0
  %962 = vmatprep.subr.mxu0 0.0
  %963 = vmatpush1.msra.mxu0 0.0
  %964 = vmatprep.subr.mxu0 0.0
  %965 = vmatpush1.msra.mxu0 0.0
  %966 = vmatprep.subr.mxu0 0.0
  %967 = vmatpush1.msra.mxu0 0.0
  %968 = vmatprep.subr.mxu0 0.0
  %969 = vmatpush1.msra.mxu0 0.0
  %970 = vmatprep.subr.mxu0 0.0
  %971 = vmatpush1.msra.mxu0 0.0
  %972 = vmatprep.subr.mxu0 0.0
  %973 = vmatpush1.msra.mxu0 0.0
  %974 = vmatprep.subr.mxu0 0.0
  %975 = vmatpush1.msra.mxu0 %v645
  %976 = vmatprep.subr.mxu0 0.0
  %977 = vmatpush1.msra.mxu0 %v644
  %978 = vmatprep.subr.mxu0 0.0
  %979 = vmatpush1.msra.mxu0 %v643
  %980 = vmatprep.subr.mxu0 0.0
  %981 = vmatpush1.msra.mxu0 %v642
  %982 = vmatprep.subr.mxu0 0.0
  %983 = vmatpush2.msra.mxu0 0.0
  %984 = vmatprep.subr.mxu0 0.0
  %985 = vmatpush2.msra.mxu0 0.0
  %986 = vmatprep.subr.mxu0 0.0
  %987 = vmatpush2.msra.mxu0 0.0
  %988 = vmatprep.subr.mxu0 0.0
  %989 = vmatpush2.msra.mxu0 0.0
  %990 = vmatprep.subr.mxu0 0.0
  %991 = vmatpush2.msra.mxu0 0.0
  %992 = vmatprep.subr.mxu0 0.0
  %993 = vmatpush2.msra.mxu0 0.0
  %994 = vmatprep.subr.mxu0 0.0
  %995 = vmatpush2.msra.mxu0 0.0
  %996 = vmatprep.subr.mxu0 0.0
  %997 = vmatpush2.msra.mxu0 0.0
  %998 = vmatprep.subr.mxu0 0.0
  %999 = vmatpush2.msra.mxu0 0.0
  %1000 = vmatprep.subr.mxu0 0.0
  %1001 = vmatpush2.msra.mxu0 0.0
  %1002 = vmatprep.subr.mxu0 0.0
  %1003 = vmatpush2.msra.mxu0 0.0
  %1004 = vmatprep.subr.mxu0 0.0
  %1005 = vmatpush2.msra.mxu0 0.0
  %1006 = vmatprep.subr.mxu0 0.0
  %1007 = vmatpush2.msra.mxu0 0.0
  %1008 = vmatprep.subr.mxu0 0.0
  %1009 = vmatpush2.msra.mxu0 0.0
  %1010 = vmatprep.subr.mxu0 0.0
  %1011 = vmatpush2.msra.mxu0 0.0
  %1012 = vmatprep.subr.mxu0 0.0
  %1013 = vmatpush2.msra.mxu0 0.0
  %1014 = vmatprep.mubr.f32.mxu0 0.0
  %1015 = vmatmul.mubr.f32.gmra.mxu0 %v948
  %v1016 = vpop.f32.mrf.mxu0
  %v1017 = vadd.f32 0.0, %v1016
  %v1018 = vpop.f32.mrf.mxu0
  %1019 = vdwg.mxu0
  %v1020 = vadd.f32 %v609, %v1017
  %v1021 = vxor.u32 %v1020, 2147483648
  %v1022 = vmul.f32 %v1021, 1.442695
  %v1023 = vpow.pop %v1022
  %v1024 = vadd.f32 %v1023, 1.0
  %v1025 = vrcp.pop %v1024
  %v1026 = vmul.f32 1.0, %v1025
  %v1027 = vtanh.pop %v1020
  %v1028 = vmul.f32 %v1026, %v938
  %1030 = vrot.lane.b32.xlu0 %v1027, 64
  %v1031 = vpop.permute.xlu0 %1030
  %v1033 = vmul.f32 %v1026, %v1031
  %1035 = vrot.lane.b32.xlu0 %v1033, 32
  %v1036 = vpop.permute.xlu0 %1035
  %v1038 = vadd.f32 %v1028, %v1036
  %v1039 = vtanh.pop %v1038
  %1041 = vrot.lane.b32.xlu0 %v1039, 64
  %v1042 = vpop.permute.xlu0 %1041
  %v1044 = vmul.f32 %v1026, %v1042
  %1046 = vrot.lane.b32.xlu0 %v1044, 32
  %v1047 = vpop.permute.xlu0 %1046
  %v1048 = vsel %vm646, %v1047, 0
  %1050 = vmatprep.subr.mxu0 0.0
  %1051 = vmatpush1.msra.mxu0 0.0
  %1052 = vmatprep.subr.mxu0 0.0
  %1053 = vmatpush1.msra.mxu0 0.0
  %1054 = vmatprep.subr.mxu0 0.0
  %1055 = vmatpush1.msra.mxu0 0.0
  %1056 = vmatprep.subr.mxu0 0.0
  %1057 = vmatpush1.msra.mxu0 0.0
  %1058 = vmatprep.subr.mxu0 0.0
  %1059 = vmatpush1.msra.mxu0 0.0
  %1060 = vmatprep.subr.mxu0 0.0
  %1061 = vmatpush1.msra.mxu0 0.0
  %1062 = vmatprep.subr.mxu0 0.0
  %1063 = vmatpush1.msra.mxu0 0.0
  %1064 = vmatprep.subr.mxu0 0.0
  %1065 = vmatpush1.msra.mxu0 0.0
  %1066 = vmatprep.subr.mxu0 0.0
  %1067 = vmatpush1.msra.mxu0 0.0
  %1068 = vmatprep.subr.mxu0 0.0
  %1069 = vmatpush1.msra.mxu0 0.0
  %1070 = vmatprep.subr.mxu0 0.0
  %1071 = vmatpush1.msra.mxu0 0.0
  %1072 = vmatprep.subr.mxu0 0.0
  %1073 = vmatpush1.msra.mxu0 0.0
  %1074 = vmatprep.subr.mxu0 0.0
  %1075 = vmatpush1.msra.mxu0 %v645
  %1076 = vmatprep.subr.mxu0 0.0
  %1077 = vmatpush1.msra.mxu0 %v644
  %1078 = vmatprep.subr.mxu0 0.0
  %1079 = vmatpush1.msra.mxu0 %v643
  %1080 = vmatprep.subr.mxu0 0.0
  %1081 = vmatpush1.msra.mxu0 %v642
  %1082 = vmatprep.subr.mxu0 0.0
  %1083 = vmatpush2.msra.mxu0 0.0
  %1084 = vmatprep.subr.mxu0 0.0
  %1085 = vmatpush2.msra.mxu0 0.0
  %1086 = vmatprep.subr.mxu0 0.0
  %1087 = vmatpush2.msra.mxu0 0.0
  %1088 = vmatprep.subr.mxu0 0.0
  %1089 = vmatpush2.msra.mxu0 0.0
  %1090 = vmatprep.subr.mxu0 0.0
  %1091 = vmatpush2.msra.mxu0 0.0
  %1092 = vmatprep.subr.mxu0 0.0
  %1093 = vmatpush2.msra.mxu0 0.0
  %1094 = vmatprep.subr.mxu0 0.0
  %1095 = vmatpush2.msra.mxu0 0.0
  %1096 = vmatprep.subr.mxu0 0.0
  %1097 = vmatpush2.msra.mxu0 0.0
  %1098 = vmatprep.subr.mxu0 0.0
  %1099 = vmatpush2.msra.mxu0 0.0
  %1100 = vmatprep.subr.mxu0 0.0
  %1101 = vmatpush2.msra.mxu0 0.0
  %1102 = vmatprep.subr.mxu0 0.0
  %1103 = vmatpush2.msra.mxu0 0.0
  %1104 = vmatprep.subr.mxu0 0.0
  %1105 = vmatpush2.msra.mxu0 0.0
  %1106 = vmatprep.subr.mxu0 0.0
  %1107 = vmatpush2.msra.mxu0 0.0
  %1108 = vmatprep.subr.mxu0 0.0
  %1109 = vmatpush2.msra.mxu0 0.0
  %1110 = vmatprep.subr.mxu0 0.0
  %1111 = vmatpush2.msra.mxu0 0.0
  %1112 = vmatprep.subr.mxu0 0.0
  %1113 = vmatpush2.msra.mxu0 0.0
  %1114 = vmatprep.mubr.f32.mxu0 0.0
  %1115 = vmatmul.mubr.f32.gmra.mxu0 %v1048
  %v1116 = vpop.f32.mrf.mxu0
  %v1117 = vadd.f32 0.0, %v1116
  %v1118 = vpop.f32.mrf.mxu0
  %1119 = vdwg.mxu0
  %v1120 = vadd.f32 %v614, %v1117
  %v1121 = vxor.u32 %v1120, 2147483648
  %v1122 = vmul.f32 %v1121, 1.442695
  %v1123 = vpow.pop %v1122
  %v1124 = vadd.f32 %v1123, 1.0
  %v1125 = vrcp.pop %v1124
  %v1126 = vmul.f32 1.0, %v1125
  %v1127 = vtanh.pop %v1120
  %v1128 = vmul.f32 %v1126, %v1038
  %1130 = vrot.lane.b32.xlu0 %v1127, 64
  %v1131 = vpop.permute.xlu0 %1130
  %v1133 = vmul.f32 %v1126, %v1131
  %1135 = vrot.lane.b32.xlu0 %v1133, 32
  %v1136 = vpop.permute.xlu0 %1135
  %v1138 = vadd.f32 %v1128, %v1136
  %v1139 = vtanh.pop %v1138
  %1141 = vrot.lane.b32.xlu0 %v1139, 64
  %v1142 = vpop.permute.xlu0 %1141
  %v1144 = vmul.f32 %v1126, %v1142
  %1146 = vrot.lane.b32.xlu0 %v1144, 32
  %v1147 = vpop.permute.xlu0 %1146
  %v1148 = vsel %vm646, %v1147, 0
  %1150 = vmatprep.subr.mxu0 0.0
  %1151 = vmatpush1.msra.mxu0 0.0
  %1152 = vmatprep.subr.mxu0 0.0
  %1153 = vmatpush1.msra.mxu0 0.0
  %1154 = vmatprep.subr.mxu0 0.0
  %1155 = vmatpush1.msra.mxu0 0.0
  %1156 = vmatprep.subr.mxu0 0.0
  %1157 = vmatpush1.msra.mxu0 0.0
  %1158 = vmatprep.subr.mxu0 0.0
  %1159 = vmatpush1.msra.mxu0 0.0
  %1160 = vmatprep.subr.mxu0 0.0
  %1161 = vmatpush1.msra.mxu0 0.0
  %1162 = vmatprep.subr.mxu0 0.0
  %1163 = vmatpush1.msra.mxu0 0.0
  %1164 = vmatprep.subr.mxu0 0.0
  %1165 = vmatpush1.msra.mxu0 0.0
  %1166 = vmatprep.subr.mxu0 0.0
  %1167 = vmatpush1.msra.mxu0 0.0
  %1168 = vmatprep.subr.mxu0 0.0
  %1169 = vmatpush1.msra.mxu0 0.0
  %1170 = vmatprep.subr.mxu0 0.0
  %1171 = vmatpush1.msra.mxu0 0.0
  %1172 = vmatprep.subr.mxu0 0.0
  %1173 = vmatpush1.msra.mxu0 0.0
  %1174 = vmatprep.subr.mxu0 0.0
  %1175 = vmatpush1.msra.mxu0 %v645
  %1176 = vmatprep.subr.mxu0 0.0
  %1177 = vmatpush1.msra.mxu0 %v644
  %1178 = vmatprep.subr.mxu0 0.0
  %1179 = vmatpush1.msra.mxu0 %v643
  %1180 = vmatprep.subr.mxu0 0.0
  %1181 = vmatpush1.msra.mxu0 %v642
  %1182 = vmatprep.subr.mxu0 0.0
  %1183 = vmatpush2.msra.mxu0 0.0
  %1184 = vmatprep.subr.mxu0 0.0
  %1185 = vmatpush2.msra.mxu0 0.0
  %1186 = vmatprep.subr.mxu0 0.0
  %1187 = vmatpush2.msra.mxu0 0.0
  %1188 = vmatprep.subr.mxu0 0.0
  %1189 = vmatpush2.msra.mxu0 0.0
  %1190 = vmatprep.subr.mxu0 0.0
  %1191 = vmatpush2.msra.mxu0 0.0
  %1192 = vmatprep.subr.mxu0 0.0
  %1193 = vmatpush2.msra.mxu0 0.0
  %1194 = vmatprep.subr.mxu0 0.0
  %1195 = vmatpush2.msra.mxu0 0.0
  %1196 = vmatprep.subr.mxu0 0.0
  %1197 = vmatpush2.msra.mxu0 0.0
  %1198 = vmatprep.subr.mxu0 0.0
  %1199 = vmatpush2.msra.mxu0 0.0
  %1200 = vmatprep.subr.mxu0 0.0
  %1201 = vmatpush2.msra.mxu0 0.0
  %1202 = vmatprep.subr.mxu0 0.0
  %1203 = vmatpush2.msra.mxu0 0.0
  %1204 = vmatprep.subr.mxu0 0.0
  %1205 = vmatpush2.msra.mxu0 0.0
  %1206 = vmatprep.subr.mxu0 0.0
  %1207 = vmatpush2.msra.mxu0 0.0
  %1208 = vmatprep.subr.mxu0 0.0
  %1209 = vmatpush2.msra.mxu0 0.0
  %1210 = vmatprep.subr.mxu0 0.0
  %1211 = vmatpush2.msra.mxu0 0.0
  %1212 = vmatprep.subr.mxu0 0.0
  %1213 = vmatpush2.msra.mxu0 0.0
  %1214 = vmatprep.mubr.f32.mxu0 0.0
  %1215 = vmatmul.mubr.f32.gmra.mxu0 %v1148
  %v1216 = vpop.f32.mrf.mxu0
  %v1217 = vadd.f32 0.0, %v1216
  %v1218 = vpop.f32.mrf.mxu0
  %1219 = vdwg.mxu0
  %v1220 = vadd.f32 %v619, %v1217
  %v1221 = vxor.u32 %v1220, 2147483648
  %v1222 = vmul.f32 %v1221, 1.442695
  %v1223 = vpow.pop %v1222
  %v1224 = vadd.f32 %v1223, 1.0
  %v1225 = vrcp.pop %v1224
  %v1226 = vmul.f32 1.0, %v1225
  %v1227 = vtanh.pop %v1220
  %v1228 = vmul.f32 %v1226, %v1138
  %1230 = vrot.lane.b32.xlu0 %v1227, 64
  %v1231 = vpop.permute.xlu0 %1230
  %v1233 = vmul.f32 %v1226, %v1231
  %1235 = vrot.lane.b32.xlu0 %v1233, 32
  %v1236 = vpop.permute.xlu0 %1235
  %v1238 = vadd.f32 %v1228, %v1236
  %v1239 = vtanh.pop %v1238
  %1241 = vrot.lane.b32.xlu0 %v1239, 64
  %v1242 = vpop.permute.xlu0 %1241
  %v1244 = vmul.f32 %v1226, %v1242
  %1246 = vrot.lane.b32.xlu0 %v1244, 32
  %v1247 = vpop.permute.xlu0 %1246
  %v1248 = vsel %vm646, %v1247, 0
  %1250 = vmatprep.subr.mxu0 0.0
  %1251 = vmatpush1.msra.mxu0 0.0
  %1252 = vmatprep.subr.mxu0 0.0
  %1253 = vmatpush1.msra.mxu0 0.0
  %1254 = vmatprep.subr.mxu0 0.0
  %1255 = vmatpush1.msra.mxu0 0.0
  %1256 = vmatprep.subr.mxu0 0.0
  %1257 = vmatpush1.msra.mxu0 0.0
  %1258 = vmatprep.subr.mxu0 0.0
  %1259 = vmatpush1.msra.mxu0 0.0
  %1260 = vmatprep.subr.mxu0 0.0
  %1261 = vmatpush1.msra.mxu0 0.0
  %1262 = vmatprep.subr.mxu0 0.0
  %1263 = vmatpush1.msra.mxu0 0.0
  %1264 = vmatprep.subr.mxu0 0.0
  %1265 = vmatpush1.msra.mxu0 0.0
  %1266 = vmatprep.subr.mxu0 0.0
  %1267 = vmatpush1.msra.mxu0 0.0
  %1268 = vmatprep.subr.mxu0 0.0
  %1269 = vmatpush1.msra.mxu0 0.0
  %1270 = vmatprep.subr.mxu0 0.0
  %1271 = vmatpush1.msra.mxu0 0.0
  %1272 = vmatprep.subr.mxu0 0.0
  %1273 = vmatpush1.msra.mxu0 0.0
  %1274 = vmatprep.subr.mxu0 0.0
  %1275 = vmatpush1.msra.mxu0 %v645
  %1276 = vmatprep.subr.mxu0 0.0
  %1277 = vmatpush1.msra.mxu0 %v644
  %1278 = vmatprep.subr.mxu0 0.0
  %1279 = vmatpush1.msra.mxu0 %v643
  %1280 = vmatprep.subr.mxu0 0.0
  %1281 = vmatpush1.msra.mxu0 %v642
  %1282 = vmatprep.subr.mxu0 0.0
  %1283 = vmatpush2.msra.mxu0 0.0
  %1284 = vmatprep.subr.mxu0 0.0
  %1285 = vmatpush2.msra.mxu0 0.0
  %1286 = vmatprep.subr.mxu0 0.0
  %1287 = vmatpush2.msra.mxu0 0.0
  %1288 = vmatprep.subr.mxu0 0.0
  %1289 = vmatpush2.msra.mxu0 0.0
  %1290 = vmatprep.subr.mxu0 0.0
  %1291 = vmatpush2.msra.mxu0 0.0
  %1292 = vmatprep.subr.mxu0 0.0
  %1293 = vmatpush2.msra.mxu0 0.0
  %1294 = vmatprep.subr.mxu0 0.0
  %1295 = vmatpush2.msra.mxu0 0.0
  %1296 = vmatprep.subr.mxu0 0.0
  %1297 = vmatpush2.msra.mxu0 0.0
  %1298 = vmatprep.subr.mxu0 0.0
  %1299 = vmatpush2.msra.mxu0 0.0
  %1300 = vmatprep.subr.mxu0 0.0
  %1301 = vmatpush2.msra.mxu0 0.0
  %1302 = vmatprep.subr.mxu0 0.0
  %1303 = vmatpush2.msra.mxu0 0.0
  %1304 = vmatprep.subr.mxu0 0.0
  %1305 = vmatpush2.msra.mxu0 0.0
  %1306 = vmatprep.subr.mxu0 0.0
  %1307 = vmatpush2.msra.mxu0 0.0
  %1308 = vmatprep.subr.mxu0 0.0
  %1309 = vmatpush2.msra.mxu0 0.0
  %1310 = vmatprep.subr.mxu0 0.0
  %1311 = vmatpush2.msra.mxu0 0.0
  %1312 = vmatprep.subr.mxu0 0.0
  %1313 = vmatpush2.msra.mxu0 0.0
  %1314 = vmatprep.mubr.f32.mxu0 0.0
  %1315 = vmatmul.mubr.f32.gmra.mxu0 %v1248
  %v1316 = vpop.f32.mrf.mxu0
  %v1317 = vadd.f32 0.0, %v1316
  %v1318 = vpop.f32.mrf.mxu0
  %1319 = vdwg.mxu0
  %v1320 = vadd.f32 %v624, %v1317
  %v1321 = vxor.u32 %v1320, 2147483648
  %v1322 = vmul.f32 %v1321, 1.442695
  %v1323 = vpow.pop %v1322
  %v1324 = vadd.f32 %v1323, 1.0
  %v1325 = vrcp.pop %v1324
  %v1326 = vmul.f32 1.0, %v1325
  %v1327 = vtanh.pop %v1320
  %v1328 = vmul.f32 %v1326, %v1238
  %1330 = vrot.lane.b32.xlu0 %v1327, 64
  %v1331 = vpop.permute.xlu0 %1330
  %v1333 = vmul.f32 %v1326, %v1331
  %1335 = vrot.lane.b32.xlu0 %v1333, 32
  %v1336 = vpop.permute.xlu0 %1335
  %v1338 = vadd.f32 %v1328, %v1336
  %v1339 = vtanh.pop %v1338
  %1341 = vrot.lane.b32.xlu0 %v1339, 64
  %v1342 = vpop.permute.xlu0 %1341
  %v1344 = vmul.f32 %v1326, %v1342
  %1346 = vrot.lane.b32.xlu0 %v1344, 32
  %v1347 = vpop.permute.xlu0 %1346
  %v1348 = vsel %vm646, %v1347, 0
  %1350 = vmatprep.subr.mxu0 0.0
  %1351 = vmatpush1.msra.mxu0 0.0
  %1352 = vmatprep.subr.mxu0 0.0
  %1353 = vmatpush1.msra.mxu0 0.0
  %1354 = vmatprep.subr.mxu0 0.0
  %1355 = vmatpush1.msra.mxu0 0.0
  %1356 = vmatprep.subr.mxu0 0.0
  %1357 = vmatpush1.msra.mxu0 0.0
  %1358 = vmatprep.subr.mxu0 0.0
  %1359 = vmatpush1.msra.mxu0 0.0
  %1360 = vmatprep.subr.mxu0 0.0
  %1361 = vmatpush1.msra.mxu0 0.0
  %1362 = vmatprep.subr.mxu0 0.0
  %1363 = vmatpush1.msra.mxu0 0.0
  %1364 = vmatprep.subr.mxu0 0.0
  %1365 = vmatpush1.msra.mxu0 0.0
  %1366 = vmatprep.subr.mxu0 0.0
  %1367 = vmatpush1.msra.mxu0 0.0
  %1368 = vmatprep.subr.mxu0 0.0
  %1369 = vmatpush1.msra.mxu0 0.0
  %1370 = vmatprep.subr.mxu0 0.0
  %1371 = vmatpush1.msra.mxu0 0.0
  %1372 = vmatprep.subr.mxu0 0.0
  %1373 = vmatpush1.msra.mxu0 0.0
  %1374 = vmatprep.subr.mxu0 0.0
  %1375 = vmatpush1.msra.mxu0 %v645
  %1376 = vmatprep.subr.mxu0 0.0
  %1377 = vmatpush1.msra.mxu0 %v644
  %1378 = vmatprep.subr.mxu0 0.0
  %1379 = vmatpush1.msra.mxu0 %v643
  %1380 = vmatprep.subr.mxu0 0.0
  %1381 = vmatpush1.msra.mxu0 %v642
  %1382 = vmatprep.subr.mxu0 0.0
  %1383 = vmatpush2.msra.mxu0 0.0
  %1384 = vmatprep.subr.mxu0 0.0
  %1385 = vmatpush2.msra.mxu0 0.0
  %1386 = vmatprep.subr.mxu0 0.0
  %1387 = vmatpush2.msra.mxu0 0.0
  %1388 = vmatprep.subr.mxu0 0.0
  %1389 = vmatpush2.msra.mxu0 0.0
  %1390 = vmatprep.subr.mxu0 0.0
  %1391 = vmatpush2.msra.mxu0 0.0
  %1392 = vmatprep.subr.mxu0 0.0
  %1393 = vmatpush2.msra.mxu0 0.0
  %1394 = vmatprep.subr.mxu0 0.0
  %1395 = vmatpush2.msra.mxu0 0.0
  %1396 = vmatprep.subr.mxu0 0.0
  %1397 = vmatpush2.msra.mxu0 0.0
  %1398 = vmatprep.subr.mxu0 0.0
  %1399 = vmatpush2.msra.mxu0 0.0
  %1400 = vmatprep.subr.mxu0 0.0
  %1401 = vmatpush2.msra.mxu0 0.0
  %1402 = vmatprep.subr.mxu0 0.0
  %1403 = vmatpush2.msra.mxu0 0.0
  %1404 = vmatprep.subr.mxu0 0.0
  %1405 = vmatpush2.msra.mxu0 0.0
  %1406 = vmatprep.subr.mxu0 0.0
  %1407 = vmatpush2.msra.mxu0 0.0
  %1408 = vmatprep.subr.mxu0 0.0
  %1409 = vmatpush2.msra.mxu0 0.0
  %1410 = vmatprep.subr.mxu0 0.0
  %1411 = vmatpush2.msra.mxu0 0.0
  %1412 = vmatprep.subr.mxu0 0.0
  %1413 = vmatpush2.msra.mxu0 0.0
  %1414 = vmatprep.mubr.f32.mxu0 0.0
  %1415 = vmatmul.mubr.f32.gmra.mxu0 %v1348
  %v1416 = vpop.f32.mrf.mxu0
  %v1417 = vadd.f32 0.0, %v1416
  %v1418 = vpop.f32.mrf.mxu0
  %1419 = vdwg.mxu0
  %v1420 = vadd.f32 %v629, %v1417
  %v1421 = vxor.u32 %v1420, 2147483648
  %v1422 = vmul.f32 %v1421, 1.442695
  %v1423 = vpow.pop %v1422
  %v1424 = vadd.f32 %v1423, 1.0
  %v1425 = vrcp.pop %v1424
  %v1426 = vmul.f32 1.0, %v1425
  %v1427 = vtanh.pop %v1420
  %v1428 = vmul.f32 %v1426, %v1338
  %1430 = vrot.lane.b32.xlu0 %v1427, 64
  %v1431 = vpop.permute.xlu0 %1430
  %v1433 = vmul.f32 %v1426, %v1431
  %1435 = vrot.lane.b32.xlu0 %v1433, 32
  %v1436 = vpop.permute.xlu0 %1435
  %v1438 = vadd.f32 %v1428, %v1436
  %v1439 = vtanh.pop %v1438
  %1441 = vrot.lane.b32.xlu0 %v1439, 64
  %v1442 = vpop.permute.xlu0 %1441
  %v1444 = vmul.f32 %v1426, %v1442
  %1446 = vrot.lane.b32.xlu0 %v1444, 32
  %v1447 = vpop.permute.xlu0 %1446
  %v1448 = vsel %vm646, %v1447, 0
  %1450 = vmatprep.subr.mxu0 0.0
  %1451 = vmatpush1.msra.mxu0 0.0
  %1452 = vmatprep.subr.mxu0 0.0
  %1453 = vmatpush1.msra.mxu0 0.0
  %1454 = vmatprep.subr.mxu0 0.0
  %1455 = vmatpush1.msra.mxu0 0.0
  %1456 = vmatprep.subr.mxu0 0.0
  %1457 = vmatpush1.msra.mxu0 0.0
  %1458 = vmatprep.subr.mxu0 0.0
  %1459 = vmatpush1.msra.mxu0 0.0
  %1460 = vmatprep.subr.mxu0 0.0
  %1461 = vmatpush1.msra.mxu0 0.0
  %1462 = vmatprep.subr.mxu0 0.0
  %1463 = vmatpush1.msra.mxu0 0.0
  %1464 = vmatprep.subr.mxu0 0.0
  %1465 = vmatpush1.msra.mxu0 0.0
  %1466 = vmatprep.subr.mxu0 0.0
  %1467 = vmatpush1.msra.mxu0 0.0
  %1468 = vmatprep.subr.mxu0 0.0
  %1469 = vmatpush1.msra.mxu0 0.0
  %1470 = vmatprep.subr.mxu0 0.0
  %1471 = vmatpush1.msra.mxu0 0.0
  %1472 = vmatprep.subr.mxu0 0.0
  %1473 = vmatpush1.msra.mxu0 0.0
  %1474 = vmatprep.subr.mxu0 0.0
  %1475 = vmatpush1.msra.mxu0 %v645
  %1476 = vmatprep.subr.mxu0 0.0
  %1477 = vmatpush1.msra.mxu0 %v644
  %1478 = vmatprep.subr.mxu0 0.0
  %1479 = vmatpush1.msra.mxu0 %v643
  %1480 = vmatprep.subr.mxu0 0.0
  %1481 = vmatpush1.msra.mxu0 %v642
  %1482 = vmatprep.subr.mxu0 0.0
  %1483 = vmatpush2.msra.mxu0 0.0
  %1484 = vmatprep.subr.mxu0 0.0
  %1485 = vmatpush2.msra.mxu0 0.0
  %1486 = vmatprep.subr.mxu0 0.0
  %1487 = vmatpush2.msra.mxu0 0.0
  %1488 = vmatprep.subr.mxu0 0.0
  %1489 = vmatpush2.msra.mxu0 0.0
  %1490 = vmatprep.subr.mxu0 0.0
  %1491 = vmatpush2.msra.mxu0 0.0
  %1492 = vmatprep.subr.mxu0 0.0
  %1493 = vmatpush2.msra.mxu0 0.0
  %1494 = vmatprep.subr.mxu0 0.0
  %1495 = vmatpush2.msra.mxu0 0.0
  %1496 = vmatprep.subr.mxu0 0.0
  %1497 = vmatpush2.msra.mxu0 0.0
  %1498 = vmatprep.subr.mxu0 0.0
  %1499 = vmatpush2.msra.mxu0 0.0
  %1500 = vmatprep.subr.mxu0 0.0
  %1501 = vmatpush2.msra.mxu0 0.0
  %1502 = vmatprep.subr.mxu0 0.0
  %1503 = vmatpush2.msra.mxu0 0.0
  %1504 = vmatprep.subr.mxu0 0.0
  %1505 = vmatpush2.msra.mxu0 0.0
  %1506 = vmatprep.subr.mxu0 0.0
  %1507 = vmatpush2.msra.mxu0 0.0
  %1508 = vmatprep.subr.mxu0 0.0
  %1509 = vmatpush2.msra.mxu0 0.0
  %1510 = vmatprep.subr.mxu0 0.0
  %1511 = vmatpush2.msra.mxu0 0.0
  %1512 = vmatprep.subr.mxu0 0.0
  %1513 = vmatpush2.msra.mxu0 0.0
  %1514 = vmatprep.mubr.f32.mxu0 0.0
  %1515 = vmatmul.mubr.f32.gmra.mxu0 %v1448
  %v1516 = vpop.f32.mrf.mxu0
  %v1517 = vadd.f32 0.0, %v1516
  %v1518 = vpop.f32.mrf.mxu0
  %1519 = vdwg.mxu0
  %v1520 = vadd.f32 %v634, %v1517
  %v1521 = vxor.u32 %v1520, 2147483648
  %v1522 = vmul.f32 %v1521, 1.442695
  %v1523 = vpow.pop %v1522
  %v1524 = vadd.f32 %v1523, 1.0
  %v1525 = vrcp.pop %v1524
  %v1526 = vmul.f32 1.0, %v1525
  %v1527 = vtanh.pop %v1520
  %v1528 = vmul.f32 %v1526, %v1438
  %1530 = vrot.lane.b32.xlu0 %v1527, 64
  %v1531 = vpop.permute.xlu0 %1530
  %v1533 = vmul.f32 %v1526, %v1531
  %1535 = vrot.lane.b32.xlu0 %v1533, 32
  %v1536 = vpop.permute.xlu0 %1535
  %v1538 = vadd.f32 %v1528, %v1536
  %v1539 = vtanh.pop %v1538
  %1541 = vrot.lane.b32.xlu0 %v1539, 64
  %v1542 = vpop.permute.xlu0 %1541
  %v1544 = vmul.f32 %v1526, %v1542
  %1546 = vrot.lane.b32.xlu0 %v1544, 32
  %v1547 = vpop.permute.xlu0 %1546
  %v1548 = vsel %vm646, %v1547, 0
  %1550 = vmatprep.subr.mxu0 0.0
  %1551 = vmatpush1.msra.mxu0 0.0
  %1552 = vmatprep.subr.mxu0 0.0
  %1553 = vmatpush1.msra.mxu0 0.0
  %1554 = vmatprep.subr.mxu0 0.0
  %1555 = vmatpush1.msra.mxu0 0.0
  %1556 = vmatprep.subr.mxu0 0.0
  %1557 = vmatpush1.msra.mxu0 0.0
  %1558 = vmatprep.subr.mxu0 0.0
  %1559 = vmatpush1.msra.mxu0 0.0
  %1560 = vmatprep.subr.mxu0 0.0
  %1561 = vmatpush1.msra.mxu0 0.0
  %1562 = vmatprep.subr.mxu0 0.0
  %1563 = vmatpush1.msra.mxu0 0.0
  %1564 = vmatprep.subr.mxu0 0.0
  %1565 = vmatpush1.msra.mxu0 0.0
  %1566 = vmatprep.subr.mxu0 0.0
  %1567 = vmatpush1.msra.mxu0 0.0
  %1568 = vmatprep.subr.mxu0 0.0
  %1569 = vmatpush1.msra.mxu0 0.0
  %1570 = vmatprep.subr.mxu0 0.0
  %1571 = vmatpush1.msra.mxu0 0.0
  %1572 = vmatprep.subr.mxu0 0.0
  %1573 = vmatpush1.msra.mxu0 0.0
  %1574 = vmatprep.subr.mxu0 0.0
  %1575 = vmatpush1.msra.mxu0 %v645
  %1576 = vmatprep.subr.mxu0 0.0
  %1577 = vmatpush1.msra.mxu0 %v644
  %1578 = vmatprep.subr.mxu0 0.0
  %1579 = vmatpush1.msra.mxu0 %v643
  %1580 = vmatprep.subr.mxu0 0.0
  %1581 = vmatpush1.msra.mxu0 %v642
  %1582 = vmatprep.subr.mxu0 0.0
  %1583 = vmatpush2.msra.mxu0 0.0
  %1584 = vmatprep.subr.mxu0 0.0
  %1585 = vmatpush2.msra.mxu0 0.0
  %1586 = vmatprep.subr.mxu0 0.0
  %1587 = vmatpush2.msra.mxu0 0.0
  %1588 = vmatprep.subr.mxu0 0.0
  %1589 = vmatpush2.msra.mxu0 0.0
  %1590 = vmatprep.subr.mxu0 0.0
  %1591 = vmatpush2.msra.mxu0 0.0
  %1592 = vmatprep.subr.mxu0 0.0
  %1593 = vmatpush2.msra.mxu0 0.0
  %1594 = vmatprep.subr.mxu0 0.0
  %1595 = vmatpush2.msra.mxu0 0.0
  %1596 = vmatprep.subr.mxu0 0.0
  %1597 = vmatpush2.msra.mxu0 0.0
  %1598 = vmatprep.subr.mxu0 0.0
  %1599 = vmatpush2.msra.mxu0 0.0
  %1600 = vmatprep.subr.mxu0 0.0
  %1601 = vmatpush2.msra.mxu0 0.0
  %1602 = vmatprep.subr.mxu0 0.0
  %1603 = vmatpush2.msra.mxu0 0.0
  %1604 = vmatprep.subr.mxu0 0.0
  %1605 = vmatpush2.msra.mxu0 0.0
  %1606 = vmatprep.subr.mxu0 0.0
  %1607 = vmatpush2.msra.mxu0 0.0
  %1608 = vmatprep.subr.mxu0 0.0
  %1609 = vmatpush2.msra.mxu0 0.0
  %1610 = vmatprep.subr.mxu0 0.0
  %1611 = vmatpush2.msra.mxu0 0.0
  %1612 = vmatprep.subr.mxu0 0.0
  %1613 = vmatpush2.msra.mxu0 0.0
  %1614 = vmatprep.mubr.f32.mxu0 0.0
  %1615 = vmatmul.mubr.f32.gmra.mxu0 %v1548
  %v1616 = vpop.f32.mrf.mxu0
  %v1617 = vadd.f32 0.0, %v1616
  %v1618 = vpop.f32.mrf.mxu0
  %1619 = vdwg.mxu0
  %v1620 = vadd.f32 %v639, %v1617
  %v1621 = vxor.u32 %v1620, 2147483648
  %v1622 = vmul.f32 %v1621, 1.442695
  %v1623 = vpow.pop %v1622
  %v1624 = vadd.f32 %v1623, 1.0
  %v1625 = vrcp.pop %v1624
  %v1626 = vmul.f32 1.0, %v1625
  %v1627 = vtanh.pop %v1620
  %v1628 = vmul.f32 %v1626, %v1538
  %1630 = vrot.lane.b32.xlu0 %v1627, 64
  %v1631 = vpop.permute.xlu0 %1630
  %v1633 = vmul.f32 %v1626, %v1631
  %1635 = vrot.lane.b32.xlu0 %v1633, 32
  %v1636 = vpop.permute.xlu0 %1635
  %v1638 = vadd.f32 %v1628, %v1636
  %v1639 = vtanh.pop %v1638
  %1641 = vrot.lane.b32.xlu0 %v1639, 64
  %v1642 = vpop.permute.xlu0 %1641
  %v1644 = vmul.f32 %v1626, %v1642
  %v1645 = vld [vmem:[%s6] sm:$0xff]
  %v1646 = vld [vmem:[%s6 + $0x8] sm:$0xff]
  %v1647 = vld [vmem:[%s6 + $0x10] sm:$0xff]
  %v1648 = vld [vmem:[%s6 + $0x18] sm:$0xff]
  %v1649 = vld [vmem:[%s7] sm:$0x1]
  %v1651 = vlaneseq
  %v1652 = vshrl.u32 %v1651, 7
  %v1653 = vsub.s32 0, %v1652
  %v1654 = vrot.slane %v1649, %v1653
  %1657 = vrot.lane.b32.xlu0 %v1644, 32
  %v1658 = vpop.permute.xlu0 %1657
  %v1659 = vsel %vm646, %v1658, 0
  %1661 = vmatprep.subr.mxu0 0.0
  %1662 = vmatpush1.msra.mxu0 0.0
  %1663 = vmatprep.subr.mxu0 0.0
  %1664 = vmatpush1.msra.mxu0 0.0
  %1665 = vmatprep.subr.mxu0 0.0
  %1666 = vmatpush1.msra.mxu0 0.0
  %1667 = vmatprep.subr.mxu0 0.0
  %1668 = vmatpush1.msra.mxu0 0.0
  %1669 = vmatprep.subr.mxu0 0.0
  %1670 = vmatpush1.msra.mxu0 0.0
  %1671 = vmatprep.subr.mxu0 0.0
  %1672 = vmatpush1.msra.mxu0 0.0
  %1673 = vmatprep.subr.mxu0 0.0
  %1674 = vmatpush1.msra.mxu0 0.0
  %1675 = vmatprep.subr.mxu0 0.0
  %1676 = vmatpush1.msra.mxu0 0.0
  %1677 = vmatprep.subr.mxu0 0.0
  %1678 = vmatpush1.msra.mxu0 0.0
  %1679 = vmatprep.subr.mxu0 0.0
  %1680 = vmatpush1.msra.mxu0 0.0
  %1681 = vmatprep.subr.mxu0 0.0
  %1682 = vmatpush1.msra.mxu0 0.0
  %1683 = vmatprep.subr.mxu0 0.0
  %1684 = vmatpush1.msra.mxu0 0.0
  %1685 = vmatprep.subr.mxu0 0.0
  %1686 = vmatpush1.msra.mxu0 %v1648
  %1687 = vmatprep.subr.mxu0 0.0
  %1688 = vmatpush1.msra.mxu0 %v1647
  %1689 = vmatprep.subr.mxu0 0.0
  %1690 = vmatpush1.msra.mxu0 %v1646
  %1691 = vmatprep.subr.mxu0 0.0
  %1692 = vmatpush1.msra.mxu0 %v1645
  %1693 = vmatprep.subr.mxu0 0.0
  %1694 = vmatpush2.msra.mxu0 0.0
  %1695 = vmatprep.subr.mxu0 0.0
  %1696 = vmatpush2.msra.mxu0 0.0
  %1697 = vmatprep.subr.mxu0 0.0
  %1698 = vmatpush2.msra.mxu0 0.0
  %1699 = vmatprep.subr.mxu0 0.0
  %1700 = vmatpush2.msra.mxu0 0.0
  %1701 = vmatprep.subr.mxu0 0.0
  %1702 = vmatpush2.msra.mxu0 0.0
  %1703 = vmatprep.subr.mxu0 0.0
  %1704 = vmatpush2.msra.mxu0 0.0
  %1705 = vmatprep.subr.mxu0 0.0
  %1706 = vmatpush2.msra.mxu0 0.0
  %1707 = vmatprep.subr.mxu0 0.0
  %1708 = vmatpush2.msra.mxu0 0.0
  %1709 = vmatprep.subr.mxu0 0.0
  %1710 = vmatpush2.msra.mxu0 0.0
  %1711 = vmatprep.subr.mxu0 0.0
  %1712 = vmatpush2.msra.mxu0 0.0
  %1713 = vmatprep.subr.mxu0 0.0
  %1714 = vmatpush2.msra.mxu0 0.0
  %1715 = vmatprep.subr.mxu0 0.0
  %1716 = vmatpush2.msra.mxu0 0.0
  %1717 = vmatprep.subr.mxu0 0.0
  %1718 = vmatpush2.msra.mxu0 0.0
  %1719 = vmatprep.subr.mxu0 0.0
  %1720 = vmatpush2.msra.mxu0 0.0
  %1721 = vmatprep.subr.mxu0 0.0
  %1722 = vmatpush2.msra.mxu0 0.0
  %1723 = vmatprep.subr.mxu0 0.0
  %1724 = vmatpush2.msra.mxu0 0.0
  %1725 = vmatprep.mubr.f32.mxu0 0.0
  %1726 = vmatmul.mubr.f32.gmra.mxu0 %v1659
  %v1727 = vpop.f32.mrf.mxu0
  %v1728 = vadd.f32 %v1654, %v1727
  %v1729 = vpop.f32.mrf.mxu0
  %1730 = vdwg.mxu0
  %1731 = vst [vmem:[%s8] sm:$0xff] %v1728
  // Predicated region
  $region34: #{cnn_lstm_forward.1} parent=0 // pred_check
    _
  $region35: #{cnn_lstm_forward.1} parent=0 // pred_check_branch
    %1733 = sbr.rel (0) target = $region37
  $region36: #{cnn_lstm_forward.1} parent=0 // pred_region
    _
  $region37: #{cnn_lstm_forward.1} parent=0 // pred_fallthru
    _
  // Predicated region
  $region38: #{cnn_lstm_forward.1} parent=0 // pred_check
    _
  $region39: #{cnn_lstm_forward.1} parent=0 // pred_check_branch
    %1735 = sbr.rel (0) target = $region41
  $region40: #{cnn_lstm_forward.1} parent=0 // pred_region
    _
  $region41: #{cnn_lstm_forward.1} parent=0 // pred_fallthru
    _

</llo_original>
